<compile_context>
chip_gen: v5e
topology: v5e:2x2
jax: 0.10.0
libtpu: 0.0.40
codegen_flags: <defaults>
</compile_context>

<pallas_src>
import functools

import jax
import jax.numpy as jnp
from jax import lax
from jax.experimental import pallas as pl
from jax.experimental.pallas import tpu as pltpu

_VMEM_LIMIT = 64 * 1024 * 1024  # generous scoped-VMEM cap (<= physical on all gens)


# ------------------------- in-kernel building blocks -------------------------

def _conv3x3_acc(f2d, H, W, w):
    """3x3 'same' conv (no bias / activation) of an (H*W, C) feature.

    Layout work (pad / shift) is done in f32 (free relabels for W % 8 == 0);
    operands are cast to bf16 only at the MXU matmul (f32 accumulate).
    For Cin < 128 all 9 taps are folded into one K=9*C matmul; for Cin >= 128
    nine accumulated (HW, C) @ (C, Cout) matmuls are used instead (avoids the
    9x im2col copy).  w: (9*C, Cout) bf16, tap-major (kh*3+kw).
    """
    HW, C = f2d.shape
    Cout = w.shape[-1]
    f = f2d.astype(jnp.float32).reshape(H, W, C)
    zr = jnp.zeros((1, W, C), jnp.float32)
    fp = jnp.concatenate([zr, f, zr], axis=0)          # pad H (leading dim)
    zc = jnp.zeros((H + 2, 1, C), jnp.float32)
    fp = jnp.concatenate([zc, fp, zc], axis=1)         # pad W (sublane dim)
    taps = [(kh, kw) for kh in range(3) for kw in range(3)]
    if C < 128:
        pieces = [fp[kh:kh + H, kw:kw + W, :] for kh, kw in taps]
        patch = jnp.concatenate(pieces, axis=-1).reshape(HW, 9 * C)
        return jnp.dot(patch.astype(jnp.bfloat16), w,
                       preferred_element_type=jnp.float32)
    acc = jnp.zeros((HW, Cout), jnp.float32)
    for t, (kh, kw) in enumerate(taps):
        piece = fp[kh:kh + H, kw:kw + W, :].reshape(HW, C).astype(jnp.bfloat16)
        acc = acc + jnp.dot(piece, w[t * C:(t + 1) * C, :],
                            preferred_element_type=jnp.float32)
    return acc                                          # (H*W, Cout) f32


def _conv_chain_kernel(*refs, H, W, nrep, relu, two_inputs, residual):
    """Fused: conv3x3[+ second-source conv3x3](+ReLU) -> nrep x conv3x3(+ReLU)
    (shared weights, fori_loop) -> [+residual]."""
    it = iter(refs)
    x_ref = next(it)
    g_ref = next(it) if two_inputs else None
    w1_ref = next(it)
    b1_ref = next(it)
    w1g_ref = next(it) if two_inputs else None
    wr_ref = next(it) if nrep > 0 else None
    br_ref = next(it) if nrep > 0 else None
    res_ref = next(it) if residual else None
    o_ref = next(it)

    acc = _conv3x3_acc(x_ref[0], H, W, w1_ref[...])
    if two_inputs:                                     # reduce='concat' (split)
        acc = acc + _conv3x3_acc(g_ref[0], H, W, w1g_ref[...])
    f = acc + b1_ref[...]
    if relu:
        f = jnp.maximum(f, 0.0)

    if nrep > 0:                                       # shared-weight rep chain
        wr = wr_ref[...]
        br = br_ref[...]

        def body(_, ff):
            return jnp.maximum(_conv3x3_acc(ff, H, W, wr) + br, 0.0)

        f = lax.fori_loop(0, nrep, body, f)

    if residual:
        f = f + res_ref[0].astype(jnp.float32)
    o_ref[0] = f.astype(o_ref.dtype)


def _up_kernel(x_ref, w_ref, b_ref, o_ref, *, h, w):
    """ConvTranspose2d(k=3, s=2, p=1) + Up crop/zero-pad, emitted as 4 phases.

    4-phase sub-pixel decomposition (no zero-inserted intermediate).  Each
    phase (py, px) is a matmul of [f, f(i,j+1), f(i+1,j), f(i+1,j+1)] with its
    phase weights + bias; the crop / zero-pad of Up.forward (last output row /
    column are zeros for the 2h x 2w reference grid) is applied with iota
    masks.  The wrapper interleaves the phases (cheap XLA reshape/transpose).
    """
    C = x_ref.shape[-1]
    Cout = o_ref.shape[-1]
    f = x_ref[0].astype(jnp.float32).reshape(h, w, C)
    zrow = jnp.zeros((1, w, C), jnp.float32)
    zcol = jnp.zeros((h, 1, C), jnp.float32)
    fd = jnp.concatenate([f[1:], zrow], axis=0)               # f[i+1, j]
    fr = jnp.concatenate([f[:, 1:], zcol], axis=1)            # f[i, j+1]
    fdr = jnp.concatenate([fd[:, 1:], zcol], axis=1)          # f[i+1, j+1]

    if C < 128:
        x4 = jnp.concatenate([f, fr, fd, fdr], axis=-1)
        x4 = x4.reshape(h * w, 4 * C).astype(jnp.bfloat16)
        slots = None
    else:
        x4 = None
        slots = [s.reshape(h * w, C).astype(jnp.bfloat16)
                 for s in (f, fr, fd, fdr)]

    b = b_ref[...]                                            # (1, Cout) f32
    row_i = lax.broadcasted_iota(jnp.int32, (h, w, Cout), 0)
    col_j = lax.broadcasted_iota(jnp.int32, (h, w, Cout), 1)
    row_ok = row_i < (h - 1)                                  # odd output rows
    col_ok = col_j < (w - 1)                                  # odd output cols
    masks = [None, col_ok, row_ok, jnp.logical_and(row_ok, col_ok)]

    for p in range(4):                                        # (ee, eo, oe, oo)
        wp = w_ref[p]                                         # (4*C, Cout) bf16
        if slots is None:
            ph = jnp.dot(x4, wp, preferred_element_type=jnp.float32)
        else:
            ph = jnp.zeros((h * w, Cout), jnp.float32)
            for s in range(4):
                ph = ph + jnp.dot(slots[s], wp[s * C:(s + 1) * C, :],
                                  preferred_element_type=jnp.float32)
        ph = ph + b
        if masks[p] is not None:
            ph = jnp.where(masks[p], ph.reshape(h, w, Cout), 0.0)
            ph = ph.reshape(h * w, Cout)
        o_ref[0, p] = ph.astype(o_ref.dtype)


# ------------------------------ Pallas wrappers -------------------------------

def _batch_spec(M, C):
    return pl.BlockSpec((1, M, C), lambda b: (b, 0, 0))


def _const_spec(shape):
    nd = len(shape)
    return pl.BlockSpec(tuple(shape), lambda b: (0,) * nd)


def conv_chain(x2d, H, W, w1, b1, wr=None, br=None, nrep=0, relu=True,
               g2d=None, w1g=None, res2d=None, out_dtype=jnp.bfloat16):
    """One fused stage: conv(+ReLU) [two-source] -> nrep reps -> [+residual]."""
    N, HW, C1 = x2d.shape
    assert HW == H * W
    assert W % 8 == 0, "W must be a multiple of 8 at every level"
    Cm = w1.shape[-1]

    inputs = [x2d]
    in_specs = [_batch_spec(HW, C1)]
    if g2d is not None:
        assert g2d.shape[:2] == (N, HW)
        inputs.append(g2d)
        in_specs.append(_batch_spec(HW, g2d.shape[-1]))
    inputs += [w1, b1]
    in_specs += [_const_spec(w1.shape), _const_spec(b1.shape)]
    if g2d is not None:
        inputs.append(w1g)
        in_specs.append(_const_spec(w1g.shape))
    if nrep > 0:
        inputs += [wr, br]
        in_specs += [_const_spec(wr.shape), _const_spec(br.shape)]
    if res2d is not None:
        assert res2d.shape[:2] == (N, HW)
        inputs.append(res2d)
        in_specs.append(_batch_spec(HW, res2d.shape[-1]))

    kernel = functools.partial(
        _conv_chain_kernel, H=H, W=W, nrep=nrep, relu=relu,
        two_inputs=g2d is not None, residual=res2d is not None)
    return pl.pallas_call(
        kernel,
        grid=(N,),
        in_specs=in_specs,
        out_specs=_batch_spec(HW, Cm),
        out_shape=jax.ShapeDtypeStruct((N, HW, Cm), out_dtype),
        compiler_params=pltpu.CompilerParams(
            dimension_semantics=("parallel",),
            vmem_limit_bytes=_VMEM_LIMIT),
    )(*inputs)


def up_transpose2d(x2d, h, w, wp, b2, ref_hw):
    """ConvTranspose2d(k=3, s=2, p=1) + Up's crop/zero-pad to ref_hw = (2h, 2w)."""
    N, hw, Cin = x2d.shape
    assert hw == h * w and w % 8 == 0
    Hr, Wr = ref_hw
    # The UNet data-flow (exact /2 pooling) guarantees the reference grid is 2x.
    assert Hr == 2 * h and Wr == 2 * w
    Cout = wp.shape[-1]

    kernel = functools.partial(_up_kernel, h=h, w=w)
    phases = pl.pallas_call(
        kernel,
        grid=(N,),
        in_specs=[_batch_spec(hw, Cin),
                  _const_spec(wp.shape),
                  _const_spec(b2.shape)],
        out_specs=pl.BlockSpec((1, 4, hw, Cout), lambda b: (b, 0, 0, 0)),
        out_shape=jax.ShapeDtypeStruct((N, 4, hw, Cout), jnp.bfloat16),
        compiler_params=pltpu.CompilerParams(
            dimension_semantics=("parallel",),
            vmem_limit_bytes=_VMEM_LIMIT),
    )(x2d, wp, b2)
    # Interleave phases (ee, eo, oe, oo) into the (Hr, Wr) grid: cheap XLA glue.
    ph6 = phases.reshape(N, 2, 2, h, w, Cout)
    out = jnp.transpose(ph6, (0, 3, 1, 4, 2, 5)).reshape(N, Hr * Wr, Cout)
    return out


def avgpool2x2(x2d, H, W):
    """Exact 2x2 average pool on an (N, H*W, C) slab (XLA; shifted adds)."""
    N, HW, C = x2d.shape
    assert HW == H * W and H % 2 == 0 and W % 2 == 0
    v = x2d.reshape(N, H // 2, 2, W // 2, 2, C).astype(jnp.float32)
    pooled = (v[:, :, 0, :, 0] + v[:, :, 0, :, 1] +
              v[:, :, 1, :, 0] + v[:, :, 1, :, 1]) * 0.25
    return pooled.reshape(N, (H // 2) * (W // 2), C).astype(jnp.bfloat16)


# ------------------------------ UNet parameters -------------------------------

def _init_conv(key, cin, cout):
    kw, kb = jax.random.split(key)
    bound = 1.0 / (cin * 9) ** 0.5
    w = jax.random.uniform(kw, (3, 3, cin, cout), jnp.float32, -bound, bound)
    b = jax.random.uniform(kb, (cout,), jnp.float32, -bound, bound)
    return w, b


def build_unet_params(key, nf_in, nf_out, nlevel, nf_base,
                      nf_max=1024, nf_gr=2, nl_base=1, nl_gr=2, nl_max=8):
    keys = iter(jax.random.split(key, 8 * nlevel + 8))
    params = {'inc': _init_conv(next(keys), nf_in, nf_base)}
    nf_lst, nl_lst = [nf_base], [nl_base]
    for lvl in range(1, nlevel):
        nf_lst.append(nf_lst[-1] * nf_gr if nf_lst[-1] * nf_gr <= nf_max else nf_max)
        nl_lst.append(nl_lst[-1] * nl_gr if nl_lst[-1] * nl_gr <= nl_max else nl_max)
        # NOTE: the PyTorch code repeats the SAME Conv2d instance nl times,
        # i.e. shared weights applied repeatedly -- mirrored here with 'rep'.
        params[f'enc_{lvl}'] = {
            'first': _init_conv(next(keys), nf_lst[-2], nf_lst[-1]),
            'rep': _init_conv(next(keys), nf_lst[-1], nf_lst[-1]),
            'nrep': nl_lst[-1],
        }
    for lvl in range(nlevel - 2, -1, -1):
        cin, cout = nf_lst[lvl + 1], nf_lst[lvl + 1] // 2
        kw, kb = jax.random.split(next(keys))
        bound = 1.0 / (cout * 9) ** 0.5
        params[f'up_{lvl}'] = (
            jax.random.uniform(kw, (cin, cout, 3, 3), jnp.float32, -bound, bound),
            jax.random.uniform(kb, (cout,), jnp.float32, -bound, bound),
        )
        params[f'dec_{lvl}'] = {
            'first': _init_conv(next(keys), nf_lst[lvl + 1], nf_lst[lvl]),
            'rep': _init_conv(next(keys), nf_lst[lvl], nf_lst[lvl]),
            'nrep': nl_lst[lvl],
        }
    params['outc'] = _init_conv(next(keys), nf_base, nf_out)
    return params


def pack_unet_params(params, nlevel):
    """Precompute kernel-ready weights once (bf16, tap-major, phase-packed)."""
    def pack_conv(w, b):
        _, _, cin, cout = w.shape
        return (w.reshape(9 * cin, cout).astype(jnp.bfloat16),
                b.reshape(1, cout).astype(jnp.float32))

    packed = {'inc': pack_conv(*params['inc']),
              'outc': pack_conv(*params['outc'])}
    for lvl in range(1, nlevel):
        blk = params[f'enc_{lvl}']
        packed[f'enc_{lvl}'] = {'first': pack_conv(*blk['first']),
                                'rep': pack_conv(*blk['rep']),
                                'nrep': blk['nrep']}
    for lvl in range(nlevel - 2, -1, -1):
        w_t, b_t = params[f'up_{lvl}']
        cin, cout = w_t.shape[0], w_t.shape[1]
        # flipped dense-conv taps: wc[kh, kw] = w_t[:, :, 2-kh, 2-kw]  (Cin, Cout)
        wc = jnp.transpose(w_t[:, :, ::-1, ::-1], (2, 3, 0, 1))
        z = jnp.zeros((cin, cout), w_t.dtype)
        # X4 slot order in the kernel: [f(i,j), f(i,j+1), f(i+1,j), f(i+1,j+1)]
        wp = jnp.stack([
            jnp.concatenate([wc[1, 1], z, z, z], axis=0),                       # (ee)
            jnp.concatenate([wc[1, 0], wc[1, 2], z, z], axis=0),                # (eo)
            jnp.concatenate([wc[0, 1], z, wc[2, 1], z], axis=0),                # (oe)
            jnp.concatenate([wc[0, 0], wc[0, 2], wc[2, 0], wc[2, 2]], axis=0),  # (oo)
        ], axis=0).astype(jnp.bfloat16)                                         # (4, 4*Cin, Cout)
        packed[f'up_{lvl}'] = {'wp': wp,
                               'b': b_t.reshape(1, cout).astype(jnp.float32),
                               'cout': cout}
        blk = params[f'dec_{lvl}']
        w1, b1 = blk['first']
        cm = w1.shape[-1]
        c_up = cout                               # up-path channels come first
        w1a = w1[:, :, :c_up, :].reshape(9 * c_up, cm).astype(jnp.bfloat16)
        c_g = w1.shape[2] - c_up
        w1b = w1[:, :, c_up:, :].reshape(9 * c_g, cm).astype(jnp.bfloat16)
        packed[f'dec_{lvl}'] = {'w1a': w1a, 'w1b': w1b,
                                'b1': b1.reshape(1, cm).astype(jnp.float32),
                                'rep': pack_conv(*blk['rep']),
                                'nrep': blk['nrep']}
    return packed


# ------------------------------ UNet forward ----------------------------------

def unet_forward_pallas(x_nchw, packed, nlevel):
    N, Cin, H, W = x_nchw.shape
    x_nhwc = jnp.transpose(x_nchw, (0, 2, 3, 1)).astype(jnp.float32)
    x2d_f32 = x_nhwc.reshape(N, H * W, Cin)
    x2d = x2d_f32.astype(jnp.bfloat16)

    w, b = packed['inc']
    feat = conv_chain(x2d, H, W, w, b, relu=True)                       # inc
    maps = []
    ch, cw = H, W
    for lvl in range(1, nlevel):
        maps.append((feat, ch, cw))
        pooled = avgpool2x2(feat, ch, cw)                               # down_k
        ch, cw = ch // 2, cw // 2
        blk = packed[f'enc_{lvl}']
        feat = conv_chain(pooled, ch, cw, blk['first'][0], blk['first'][1],
                          wr=blk['rep'][0], br=blk['rep'][1],
                          nrep=blk['nrep'], relu=True)                  # enc_k
    for lvl in range(nlevel - 2, -1, -1):
        g2d, gh, gw = maps[lvl]
        up = packed[f'up_{lvl}']
        up2d = up_transpose2d(feat, ch, cw, up['wp'], up['b'], (gh, gw))  # up_k
        blk = packed[f'dec_{lvl}']
        feat = conv_chain(up2d, gh, gw, blk['w1a'], blk['b1'],
                          wr=blk['rep'][0], br=blk['rep'][1],
                          nrep=blk['nrep'], relu=True,
                          g2d=g2d, w1g=blk['w1b'])                      # concat+dec_k
        ch, cw = gh, gw
    w, b = packed['outc']
    out2d = conv_chain(feat, ch, cw, w, b, relu=False,
                       res2d=x2d_f32, out_dtype=jnp.float32)            # outc + residual
    out = out2d.reshape(N, H, W, -1)
    return jnp.transpose(out, (0, 3, 1, 2))                             # NHWC -> NCHW


# --------------------------- pure-JAX reference --------------------------------

def _ref_conv(x, w, b, relu):
    out = lax.conv_general_dilated(x, w, (1, 1), ((1, 1), (1, 1)),
                                   dimension_numbers=('NHWC', 'HWIO', 'NHWC')) + b
    return jnp.maximum(out, 0.0) if relu else out


def _ref_block(feat, block):
    w, b = block['first']
    feat = _ref_conv(feat, w, b, True)
    w, b = block['rep']
    for _ in range(block['nrep']):
        feat = _ref_conv(feat, w, b, True)
    return feat


def unet_forward_ref(x_nchw, params, nlevel):
    x = jnp.transpose(x_nchw, (0, 2, 3, 1)).astype(jnp.float32)
    w, b = params['inc']
    feat = _ref_conv(x, w, b, True)
    maps = []
    for lvl in range(1, nlevel):
        maps.append(feat)
        N, H, W, C = feat.shape
        feat = feat.reshape(N, H // 2, 2, W // 2, 2, C).mean(axis=(2, 4))
        feat = _ref_block(feat, params[f'enc_{lvl}'])
    for lvl in range(nlevel - 2, -1, -1):
        g = maps[lvl]
        w_t, b_t = params[f'up_{lvl}']
        w_conv = jnp.transpose(w_t[:, :, ::-1, ::-1], (2, 3, 0, 1))
        up = lax.conv_general_dilated(feat, w_conv, (1, 1), ((1, 1), (1, 1)),
                                      lhs_dilation=(2, 2),
                                      dimension_numbers=('NHWC', 'HWIO', 'NHWC')) + b_t
        Hup, Wup = up.shape[1], up.shape[2]
        Hr, Wr = g.shape[1], g.shape[2]
        up = up[:, :min(Hup, Hr), :min(Wup, Wr), :]
        dh, dw = max(Hr - Hup, 0), max(Wr - Wup, 0)
        up = jnp.pad(up, ((0, 0), (dh // 2, dh - dh // 2),
                          (dw // 2, dw - dw // 2), (0, 0)))
        feat = jnp.concatenate([up, g], axis=-1)
        feat = _ref_block(feat, params[f'dec_{lvl}'])
    w, b = params['outc']
    out = _ref_conv(feat, w, b, False) + x
    return jnp.transpose(out, (0, 3, 1, 2))


# ------------------------------------ main -------------------------------------

if __name__ == "__main__":
    key = jax.random.PRNGKey(0)
    kx, kp = jax.random.split(key)
    # UNet(nf_in=4, nf_out=4, nlevel=2, nf_base=8); input NCHW like PyTorch.
    x = jax.random.normal(kx, (2, 4, 16, 16), jnp.float32)
    params = build_unet_params(kp, nf_in=4, nf_out=4, nlevel=2, nf_base=8)
    packed = pack_unet_params(params, nlevel=2)

    out = unet_forward_pallas(x, packed, nlevel=2)
    out = jax.block_until_ready(out)
    assert out.shape == (2, 4, 16, 16)

    ref = unet_forward_ref(x, params, nlevel=2)
    err = float(jnp.max(jnp.abs(out - ref)))
    # MXU operands + intermediate HBM slabs are bf16 (f32 accumulate / residual),
    # so compare at bf16 scale.
    assert err < 1e-1, f"max abs diff vs f32 reference = {err}"
    print("KERNEL_OK")
</pallas_src>

<mosaic_0001>
module attributes {stable_mosaic.version = 11 : i64} {
  func.func @_conv_chain_kernel(%arg0: i32, %arg1: memref<1x256x4xbf16, #tpu.memory_space<vmem>>, %arg2: memref<36x8xbf16, #tpu.memory_space<vmem>>, %arg3: memref<1x8xf32, #tpu.memory_space<vmem>>, %arg4: memref<1x256x8xbf16, #tpu.memory_space<vmem>>) attributes {dimension_semantics = [#tpu.dimension_semantics<parallel>], iteration_bounds = array<i64: 2>, scalar_prefetch = 0 : i64, scratch_operands = 0 : i64, tpu.core_type = #tpu.core_type<tc>, window_params = [{transform_indices = @transform_0, window_bounds = array<i64: 1, 256, 4>}, {pipeline_mode = #tpu.pipeline_mode<synchronous>, transform_indices = @transform_1, window_bounds = array<i64: 36, 8>}, {pipeline_mode = #tpu.pipeline_mode<synchronous>, transform_indices = @transform_2, window_bounds = array<i64: 1, 8>}, {transform_indices = @transform_3, window_bounds = array<i64: 1, 256, 8>}]} {
    %c0 = arith.constant 0 : index
    %c0_0 = arith.constant 0 : index
    %c0_1 = arith.constant 0 : index
    %0 = vector.load %arg1[%c0, %c0_0, %c0_1] : memref<1x256x4xbf16, #tpu.memory_space<vmem>>, vector<1x256x4xbf16>
    %1 = vector.shape_cast %0 : vector<1x256x4xbf16> to vector<256x4xbf16>
    %c0_2 = arith.constant 0 : index
    %c0_3 = arith.constant 0 : index
    %2 = vector.load %arg2[%c0_2, %c0_3] : memref<36x8xbf16, #tpu.memory_space<vmem>>, vector<36x8xbf16>
    %3 = arith.extf %1 : vector<256x4xbf16> to vector<256x4xf32>
    %4 = vector.shape_cast %3 : vector<256x4xf32> to vector<16x16x4xf32>
    %cst = arith.constant 0.000000e+00 : f32
    %5 = vector.broadcast %cst : f32 to vector<1x16x4xf32>
    %6 = tpu.concatenate %5, %4, %5 in 0 : vector<1x16x4xf32>, vector<16x16x4xf32>, vector<1x16x4xf32> -> vector<18x16x4xf32>
    %cst_4 = arith.constant 0.000000e+00 : f32
    %7 = vector.broadcast %cst_4 : f32 to vector<18x1x4xf32>
    %8 = tpu.concatenate %7, %6, %7 in 1 : vector<18x1x4xf32>, vector<18x16x4xf32>, vector<18x1x4xf32> -> vector<18x18x4xf32>
    %9 = vector.extract_strided_slice %8 {offsets = [0, 0, 0], sizes = [16, 16, 4], strides = [1, 1, 1]} : vector<18x18x4xf32> to vector<16x16x4xf32>
    %10 = vector.extract_strided_slice %8 {offsets = [0, 1, 0], sizes = [16, 16, 4], strides = [1, 1, 1]} : vector<18x18x4xf32> to vector<16x16x4xf32>
    %11 = vector.extract_strided_slice %8 {offsets = [0, 2, 0], sizes = [16, 16, 4], strides = [1, 1, 1]} : vector<18x18x4xf32> to vector<16x16x4xf32>
    %12 = vector.extract_strided_slice %8 {offsets = [1, 0, 0], sizes = [16, 16, 4], strides = [1, 1, 1]} : vector<18x18x4xf32> to vector<16x16x4xf32>
    %13 = vector.extract_strided_slice %8 {offsets = [1, 1, 0], sizes = [16, 16, 4], strides = [1, 1, 1]} : vector<18x18x4xf32> to vector<16x16x4xf32>
    %14 = vector.extract_strided_slice %8 {offsets = [1, 2, 0], sizes = [16, 16, 4], strides = [1, 1, 1]} : vector<18x18x4xf32> to vector<16x16x4xf32>
    %15 = vector.extract_strided_slice %8 {offsets = [2, 0, 0], sizes = [16, 16, 4], strides = [1, 1, 1]} : vector<18x18x4xf32> to vector<16x16x4xf32>
    %16 = vector.extract_strided_slice %8 {offsets = [2, 1, 0], sizes = [16, 16, 4], strides = [1, 1, 1]} : vector<18x18x4xf32> to vector<16x16x4xf32>
    %17 = vector.extract_strided_slice %8 {offsets = [2, 2, 0], sizes = [16, 16, 4], strides = [1, 1, 1]} : vector<18x18x4xf32> to vector<16x16x4xf32>
    %18 = tpu.concatenate %9, %10, %11, %12, %13, %14, %15, %16, %17 in 2 : vector<16x16x4xf32>, vector<16x16x4xf32>, vector<16x16x4xf32>, vector<16x16x4xf32>, vector<16x16x4xf32>, vector<16x16x4xf32>, vector<16x16x4xf32>, vector<16x16x4xf32>, vector<16x16x4xf32> -> vector<16x16x36xf32>
    %19 = vector.shape_cast %18 : vector<16x16x36xf32> to vector<256x36xf32>
    %20 = arith.truncf %19 : vector<256x36xf32> to vector<256x36xbf16>
    %cst_5 = arith.constant dense<0.000000e+00> : vector<256x8xf32>
    %21 = tpu.matmul %20, %2, %cst_5 {dimension_numbers = #tpu.dot_dimension_numbers<[1], [0], [0], [1], [0, 0, 1, 1], [], []>} : vector<256x36xbf16>, vector<36x8xbf16>, vector<256x8xf32> -> vector<256x8xf32>
    %c0_6 = arith.constant 0 : index
    %c0_7 = arith.constant 0 : index
    %22 = vector.load %arg3[%c0_6, %c0_7] : memref<1x8xf32, #tpu.memory_space<vmem>>, vector<1x8xf32>
    %23 = vector.broadcast %22 : vector<1x8xf32> to vector<256x8xf32>
    %24 = arith.addf %21, %23 : vector<256x8xf32>
    %cst_8 = arith.constant 0.000000e+00 : f32
    %25 = vector.broadcast %cst_8 : f32 to vector<256x8xf32>
    %26 = arith.maximumf %24, %25 : vector<256x8xf32>
    %27 = arith.truncf %26 : vector<256x8xf32> to vector<256x8xbf16>
    %c0_9 = arith.constant 0 : index
    %c0_10 = arith.constant 0 : index
    %c0_11 = arith.constant 0 : index
    %28 = vector.load %arg4[%c0_9, %c0_10, %c0_11] : memref<1x256x8xbf16, #tpu.memory_space<vmem>>, vector<1x256x8xbf16>
    %29 = vector.shape_cast %28 : vector<1x256x8xbf16> to vector<256x8xbf16>
    %30 = vector.shape_cast %27 : vector<256x8xbf16> to vector<1x256x8xbf16>
    tpu.vector_store %arg4[%c0_9, %c0_10, %c0_11], %30 {strides = array<i32>} : memref<1x256x8xbf16, #tpu.memory_space<vmem>>, vector<1x256x8xbf16>,
    return
  }
  func.func @transform_0(%arg0: i32) -> (i32, i32, i32) {
    %c0_i32 = arith.constant 0 : i32
    %c0_i32_0 = arith.constant 0 : i32
    %c0_i32_1 = arith.constant 0 : i32
    return %arg0, %c0_i32, %c0_i32_0 : i32, i32, i32
  }
  func.func @transform_1(%arg0: i32) -> (i32, i32) {
    %c0_i32 = arith.constant 0 : i32
    %c0_i32_0 = arith.constant 0 : i32
    %c0_i32_1 = arith.constant 0 : i32
    return %c0_i32, %c0_i32_0 : i32, i32
  }
  func.func @transform_2(%arg0: i32) -> (i32, i32) {
    %c0_i32 = arith.constant 0 : i32
    %c0_i32_0 = arith.constant 0 : i32
    %c0_i32_1 = arith.constant 0 : i32
    return %c0_i32, %c0_i32_0 : i32, i32
  }
  func.func @transform_3(%arg0: i32) -> (i32, i32, i32) {
    %c0_i32 = arith.constant 0 : i32
    %c0_i32_0 = arith.constant 0 : i32
    %c0_i32_1 = arith.constant 0 : i32
    return %arg0, %c0_i32, %c0_i32_0 : i32, i32, i32
  }
}

</mosaic_0001>

<llo_original>
// kernel: tpu_custom_call.1
$region0: #{tpu_custom_call.1}
  #allocation0 [shape = 'u32[]', space=smem, size = 0x4, offset = 0x4, fixed_abs, tag = 'smem constant byte address 0x4 - core index']
  #allocation1 [shape = 'u32[72,128]{1,0:T(1,128)}', space=vmem, size = 0x9000, scoped, tag = 'internal scratch']
  %s0 = inlined_call_operand.vmem [shape: bf16[2,256,4], index: 0, kind: input, shape index: {}]
  %s1 = inlined_call_operand.vmem [shape: bf16[36,8], index: 1, kind: input, shape index: {}]
  %s2 = inlined_call_operand.vmem [shape: f32[1,8], index: 2, kind: input, shape index: {}]
  %s3 = inlined_call_operand.vmem [shape: bf16[2,256,8], index: 3, kind: output, shape index: {}]
  %s4 = sld [smem:[#allocation0]]
  $region45: #{tpu_custom_call.1} parent=0
    _
  %s6 = ssub.s32 1, %s4
  %s7 = scalar_select 0, %s6, %s4
  loop: start=0, step=1, limit=4
  $region2: #{tpu_custom_call.1} parent=0 // loop_pre_header
    _
  $region3: #{tpu_custom_call.1} parent=0 // loop_header
    %s9 = sphi 0, %s13
    %p10 = scmp.ge.s32.totalorder %s9, 4
    %s19 = sphi 0, %s21
    %s22 = sphi 0, %s19
    %s23 = sphi 0, %s22
    %s39 = sphi 0, %s23
    %s43 = sphi 0, %s43
    %s45 = sphi 0, %s43
    %s46 = sphi 0, %s45
    %s60 = sphi 0, %s46
    %s64 = sphi 0, %s64
    %s66 = sphi 0, %s64
    %s67 = sphi 0, %s66
    %s81 = sphi 0, %s67
    %s87 = sphi 0, %s89
    %s90 = sphi 0, %s87
    %s91 = sphi 0, %s90
    %s107 = sphi 0, %s91
  $region4: #{tpu_custom_call.1} parent=0 // loop_header_branch
    %12 = sbr.rel (%p10) target = $region8
  $region5: #{tpu_custom_call.1} parent=0 // loop_body
    %s14 = ssub.s32 %s9, 1
    %s15 = ssub.s32 %s9, 2
    %s16 = sadd.s32 %s9, 1
    %s17 = ssub.s32 %s9, %s16
    %p18 = scmp.eq.s32.totalorder %s17, 0
    %s20 = sadd.s32 %s19, 1
    %s21 = scalar_select %p18, %s19, %s20
    %p24 = pneg %p18
    %p25 = scmp.eq.s32.totalorder %s9, 1
    %p26 = por %p24, %p25
    %p27 = scmp.ne.s32.totalorder %s19, %s22
    %p28 = scmp.eq.s32.totalorder %s9, 0
    %p29 = por %p27, %p28
    %p30 = scmp.ne.s32.totalorder %s19, %s22
    %p31 = scmp.eq.s32.totalorder %s14, 1
    %p32 = por %p30, %p31
    %p33 = scmp.ne.s32.totalorder %s22, %s23
    %p34 = scmp.eq.s32.totalorder %s14, 0
    %p35 = por %p33, %p34
    %p36 = scmp.ne.s32.totalorder %s22, %s23
    %p37 = scmp.eq.s32.totalorder %s15, 1
    %p38 = por %p36, %p37
    %p40 = scmp.ne.s32.totalorder %s23, %s39
    %p41 = scmp.eq.s32.totalorder %s15, 0
    %p42 = por %p40, %p41
    %s44 = sadd.s32 %s43, 1
    %p47 = scmp.eq.s32.totalorder %s9, 1
    %p48 = scmp.ne.s32.totalorder %s43, %s45
    %p49 = scmp.eq.s32.totalorder %s9, 0
    %p50 = por %p48, %p49
    %p51 = scmp.ne.s32.totalorder %s43, %s45
    %p52 = scmp.eq.s32.totalorder %s14, 1
    %p53 = por %p51, %p52
    %p54 = scmp.ne.s32.totalorder %s45, %s46
    %p55 = scmp.eq.s32.totalorder %s14, 0
    %p56 = por %p54, %p55
    %p57 = scmp.ne.s32.totalorder %s45, %s46
    %p58 = scmp.eq.s32.totalorder %s15, 1
    %p59 = por %p57, %p58
    %p61 = scmp.ne.s32.totalorder %s46, %s60
    %p62 = scmp.eq.s32.totalorder %s15, 0
    %p63 = por %p61, %p62
    %s65 = sadd.s32 %s64, 1
    %p68 = scmp.eq.s32.totalorder %s9, 1
    %p69 = scmp.ne.s32.totalorder %s64, %s66
    %p70 = scmp.eq.s32.totalorder %s9, 0
    %p71 = por %p69, %p70
    %p72 = scmp.ne.s32.totalorder %s64, %s66
    %p73 = scmp.eq.s32.totalorder %s14, 1
    %p74 = por %p72, %p73
    %p75 = scmp.ne.s32.totalorder %s66, %s67
    %p76 = scmp.eq.s32.totalorder %s14, 0
    %p77 = por %p75, %p76
    %p78 = scmp.ne.s32.totalorder %s66, %s67
    %p79 = scmp.eq.s32.totalorder %s15, 1
    %p80 = por %p78, %p79
    %p82 = scmp.ne.s32.totalorder %s67, %s81
    %p83 = scmp.eq.s32.totalorder %s15, 0
    %p84 = por %p82, %p83
    %s85 = ssub.s32 %s9, %s16
    %p86 = scmp.eq.s32.totalorder %s85, 0
    %s88 = sadd.s32 %s87, 1
    %s89 = scalar_select %p86, %s87, %s88
    %p92 = pneg %p86
    %p93 = scmp.eq.s32.totalorder %s9, 1
    %p94 = por %p92, %p93
    %p95 = scmp.ne.s32.totalorder %s87, %s90
    %p96 = scmp.eq.s32.totalorder %s9, 0
    %p97 = por %p95, %p96
    %p98 = scmp.ne.s32.totalorder %s87, %s90
    %p99 = scmp.eq.s32.totalorder %s14, 1
    %p100 = por %p98, %p99
    %p101 = scmp.ne.s32.totalorder %s90, %s91
    %p102 = scmp.eq.s32.totalorder %s14, 0
    %p103 = por %p101, %p102
    %p104 = scmp.ne.s32.totalorder %s90, %s91
    %p105 = scmp.eq.s32.totalorder %s15, 1
    %p106 = por %p104, %p105
    %p108 = scmp.ne.s32.totalorder %s91, %s107
    %p109 = scmp.eq.s32.totalorder %s15, 0
    %p110 = por %p108, %p109
    %p111 = scmp.le.s32.totalorder 1, %s9
    %p112 = scmp.lt.s32.totalorder %s9, 3
    %p113 = pnand %p111, %p112
    %p114 = pneg %p113
    // Predicated region
    $region9: #{tpu_custom_call.1} parent=5 // pred_check
      _
    $region10: #{tpu_custom_call.1} parent=5 // pred_check_branch
      %116 = sbr.rel (%p113) target = $region12
    $region11: #{tpu_custom_call.1} parent=5 // pred_region
      %s117 = ssub.s32 %s9, 1
      // Predicated region
      $region13: #{tpu_custom_call.1} parent=11 // pred_check
        %p118 = pneg %p56
      $region14: #{tpu_custom_call.1} parent=11 // pred_check_branch
        %120 = sbr.rel (%p118) target = $region16
      $region15: #{tpu_custom_call.1} parent=11 // pred_region
        _
      $region16: #{tpu_custom_call.1} parent=11 // pred_fallthru
        _
      // Predicated region
      $region17: #{tpu_custom_call.1} parent=11 // pred_check
        %p121 = pneg %p77
      $region18: #{tpu_custom_call.1} parent=11 // pred_check_branch
        %123 = sbr.rel (%p121) target = $region20
      $region19: #{tpu_custom_call.1} parent=11 // pred_region
        _
      $region20: #{tpu_custom_call.1} parent=11 // pred_fallthru
        _
    $region12: #{tpu_custom_call.1} parent=5 // pred_fallthru
      _
    %p124 = scmp.lt.s32.totalorder %s9, 2
    // Predicated region
    $region21: #{tpu_custom_call.1} parent=5 // pred_check
      %p125 = pneg %p124
    $region22: #{tpu_custom_call.1} parent=5 // pred_check_branch
      %127 = sbr.rel (%p125) target = $region24
    $region23: #{tpu_custom_call.1} parent=5 // pred_region
      // Predicated region
      $region25: #{tpu_custom_call.1} parent=23 // pred_check
        %p128 = pneg %p29
      $region26: #{tpu_custom_call.1} parent=23 // pred_check_branch
        %130 = sbr.rel (%p128) target = $region28
      $region27: #{tpu_custom_call.1} parent=23 // pred_region
        %p131 = scmp.lt.s32.totalorder %s9, 1
        %s132 = scalar_select %p131, %s9, 1
        %s133 = smul.addr %s132, 32
        %s134 = smul.addr %s133, 4
        %s135 = scalar_lea.vmem %s0, %s134
      $region28: #{tpu_custom_call.1} parent=23 // pred_fallthru
        _
    $region24: #{tpu_custom_call.1} parent=5 // pred_fallthru
      _
    %p136 = scmp.le.s32.totalorder 1, %s9
    %p137 = scmp.lt.s32.totalorder %s9, 3
    %p138 = pnand %p136, %p137
    %p139 = pneg %p138
    // Predicated region
    $region29: #{tpu_custom_call.1} parent=5 // pred_check
      _
    $region30: #{tpu_custom_call.1} parent=5 // pred_check_branch
      %141 = sbr.rel (%p138) target = $region32
    $region31: #{tpu_custom_call.1} parent=5 // pred_region
      %s142 = ssub.s32 %s9, 1
      %p143 = scmp.lt.s32.totalorder %s14, 1
      %s144 = scalar_select %p143, %s14, 1
      %s145 = smul.addr %s144, 32
      %s146 = smul.addr %s145, 4
      %s147 = scalar_lea.vmem %s0, %s146
      %p148 = pneg %p35
      %p149 = pneg %p32
      %p150 = pneg %p56
      %p151 = pneg %p53
      %p152 = pneg %p77
      %p153 = pneg %p74
      %p154 = pneg %p103
      %p155 = pneg %p100
      %p156 = scmp.lt.s32.totalorder %s14, 1
      %s157 = scalar_select %p156, %s14, 1
      %s158 = smul.addr %s157, 32
      %s159 = smul.addr %s158, 4
      %s160 = scalar_lea.vmem %s3, %s159
      %p161 = scmp.lt.s32.totalorder %s14, 1
      %s162 = scalar_select %p161, %s14, 1
      %s163 = smul.addr %s162, 32
      %s164 = smul.addr %s163, 4
      %s165 = scalar_lea.vmem %s0, %s164
      %p166 = scmp.lt.s32.totalorder %s14, 1
      %s167 = scalar_select %p166, %s14, 1
      %s168 = smul.addr %s167, 32
      %s169 = smul.addr %s168, 4
      %s170 = scalar_lea.vmem %s3, %s169
      %v172 = vld [vmem:[%s165] sm:$0xf]
      %v173 = vld [vmem:[%s165 + $0x4] sm:$0xf]
      %v174 = vld [vmem:[%s165 + $0x8] sm:$0xf]
      %v175 = vld [vmem:[%s165 + $0xc] sm:$0xf]
      %v176 = vld [vmem:[%s165 + $0x10] sm:$0xf]
      %v177 = vld [vmem:[%s165 + $0x14] sm:$0xf]
      %v178 = vld [vmem:[%s165 + $0x18] sm:$0xf]
      %v179 = vld [vmem:[%s165 + $0x1c] sm:$0xf]
      %v180 = vld [vmem:[%s165 + $0x20] sm:$0xf]
      %v181 = vld [vmem:[%s165 + $0x24] sm:$0xf]
      %v182 = vld [vmem:[%s165 + $0x28] sm:$0xf]
      %v183 = vld [vmem:[%s165 + $0x2c] sm:$0xf]
      %v184 = vld [vmem:[%s165 + $0x30] sm:$0xf]
      %v185 = vld [vmem:[%s165 + $0x34] sm:$0xf]
      %v186 = vld [vmem:[%s165 + $0x38] sm:$0xf]
      %v187 = vld [vmem:[%s165 + $0x3c] sm:$0xf]
      %v188 = vld [vmem:[%s165 + $0x40] sm:$0xf]
      %v189 = vld [vmem:[%s165 + $0x44] sm:$0xf]
      %v190 = vld [vmem:[%s165 + $0x48] sm:$0xf]
      %v191 = vld [vmem:[%s165 + $0x4c] sm:$0xf]
      %v192 = vld [vmem:[%s165 + $0x50] sm:$0xf]
      %v193 = vld [vmem:[%s165 + $0x54] sm:$0xf]
      %v194 = vld [vmem:[%s165 + $0x58] sm:$0xf]
      %v195 = vld [vmem:[%s165 + $0x5c] sm:$0xf]
      %v196 = vld [vmem:[%s165 + $0x60] sm:$0xf]
      %v197 = vld [vmem:[%s165 + $0x64] sm:$0xf]
      %v198 = vld [vmem:[%s165 + $0x68] sm:$0xf]
      %v199 = vld [vmem:[%s165 + $0x6c] sm:$0xf]
      %v200 = vld [vmem:[%s165 + $0x70] sm:$0xf]
      %v201 = vld [vmem:[%s165 + $0x74] sm:$0xf]
      %v202 = vld [vmem:[%s165 + $0x78] sm:$0xf]
      %v203 = vld [vmem:[%s165 + $0x7c] sm:$0xf]
      %v204 = vld [vmem:[%s1] sm:$0xf]
      %v205 = vld [vmem:[%s1 + $0x4] sm:$0xf]
      %v206 = vld [vmem:[%s1 + $0x8] sm:$0xf]
      %v207 = vld [vmem:[%s1 + $0xc] sm:$0xf]
      %v208 = vld [vmem:[%s1 + $0x10] sm:$0x3]
      %v209 = vunpack.c.l.bf16 %v172
      %v210 = vunpack.c.l.bf16 %v173
      %v211 = vunpack.c.l.bf16 %v174
      %v212 = vunpack.c.l.bf16 %v175
      %v213 = vunpack.c.l.bf16 %v176
      %v214 = vunpack.c.l.bf16 %v177
      %v215 = vunpack.c.l.bf16 %v178
      %v216 = vunpack.c.l.bf16 %v179
      %v217 = vunpack.c.l.bf16 %v180
      %v218 = vunpack.c.l.bf16 %v181
      %v219 = vunpack.c.l.bf16 %v182
      %v220 = vunpack.c.l.bf16 %v183
      %v221 = vunpack.c.l.bf16 %v184
      %v222 = vunpack.c.l.bf16 %v185
      %v223 = vunpack.c.l.bf16 %v186
      %v224 = vunpack.c.l.bf16 %v187
      %v225 = vunpack.c.l.bf16 %v188
      %v226 = vunpack.c.l.bf16 %v189
      %v227 = vunpack.c.l.bf16 %v190
      %v228 = vunpack.c.l.bf16 %v191
      %v229 = vunpack.c.l.bf16 %v192
      %v230 = vunpack.c.l.bf16 %v193
      %v231 = vunpack.c.l.bf16 %v194
      %v232 = vunpack.c.l.bf16 %v195
      %v233 = vunpack.c.l.bf16 %v196
      %v234 = vunpack.c.l.bf16 %v197
      %v235 = vunpack.c.l.bf16 %v198
      %v236 = vunpack.c.l.bf16 %v199
      %v237 = vunpack.c.l.bf16 %v200
      %v238 = vunpack.c.l.bf16 %v201
      %v239 = vunpack.c.l.bf16 %v202
      %v240 = vunpack.c.l.bf16 %v203
      %vm274 = vcmask 1040384
      %v275 = vrot.slane 0.0, 7
      %v276 = vsel %vm274, %v275, %v275
      %v277 = vrot.slane %v209, 7
      %v278 = vrot.slane %v210, 7
      %v279 = vsel %vm274, %v277, %v278
      %v280 = vrot.slane %v211, 7
      %v281 = vrot.slane %v212, 7
      %v282 = vsel %vm274, %v280, %v281
      %v283 = vrot.slane %v213, 7
      %v284 = vrot.slane %v214, 7
      %v285 = vsel %vm274, %v283, %v284
      %v286 = vrot.slane %v215, 7
      %v287 = vrot.slane %v216, 7
      %v288 = vsel %vm274, %v286, %v287
      %v289 = vrot.slane %v217, 7
      %v290 = vrot.slane %v218, 7
      %v291 = vsel %vm274, %v289, %v290
      %v292 = vrot.slane %v219, 7
      %v293 = vrot.slane %v220, 7
      %v294 = vsel %vm274, %v292, %v293
      %v295 = vrot.slane %v221, 7
      %v296 = vrot.slane %v222, 7
      %v297 = vsel %vm274, %v295, %v296
      %v298 = vrot.slane %v223, 7
      %v299 = vrot.slane %v224, 7
      %v300 = vsel %vm274, %v298, %v299
      %v301 = vrot.slane %v225, 7
      %v302 = vrot.slane %v226, 7
      %v303 = vsel %vm274, %v301, %v302
      %v304 = vrot.slane %v227, 7
      %v305 = vrot.slane %v228, 7
      %v306 = vsel %vm274, %v304, %v305
      %v307 = vrot.slane %v229, 7
      %v308 = vrot.slane %v230, 7
      %v309 = vsel %vm274, %v307, %v308
      %v310 = vrot.slane %v231, 7
      %v311 = vrot.slane %v232, 7
      %v312 = vsel %vm274, %v310, %v311
      %v313 = vrot.slane %v233, 7
      %v314 = vrot.slane %v234, 7
      %v315 = vsel %vm274, %v313, %v314
      %v316 = vrot.slane %v235, 7
      %v317 = vrot.slane %v236, 7
      %v318 = vsel %vm274, %v316, %v317
      %v319 = vrot.slane %v237, 7
      %v320 = vrot.slane %v238, 7
      %v321 = vsel %vm274, %v319, %v320
      %v322 = vrot.slane %v239, 7
      %v323 = vrot.slane %v240, 7
      %v324 = vsel %vm274, %v322, %v323
      %v374 = vsel %vm274, 0.0, %v275
      %v375 = vsel %vm274, 0.0, %v277
      %v376 = vsel %vm274, 0.0, %v280
      %v377 = vsel %vm274, 0.0, %v283
      %v378 = vsel %vm274, 0.0, %v286
      %v379 = vsel %vm274, 0.0, %v289
      %v380 = vsel %vm274, 0.0, %v292
      %v381 = vsel %vm274, 0.0, %v295
      %v382 = vsel %vm274, 0.0, %v298
      %v383 = vsel %vm274, 0.0, %v301
      %v384 = vsel %vm274, 0.0, %v304
      %v385 = vsel %vm274, 0.0, %v307
      %v386 = vsel %vm274, 0.0, %v310
      %v387 = vsel %vm274, 0.0, %v313
      %v388 = vsel %vm274, 0.0, %v316
      %v389 = vsel %vm274, 0.0, %v319
      %v390 = vsel %vm274, 0.0, %v322
      %v391 = vsel %vm274, %v275, 0.0
      %v392 = vsel %vm274, %v278, 0.0
      %v393 = vsel %vm274, %v281, 0.0
      %v394 = vsel %vm274, %v284, 0.0
      %v395 = vsel %vm274, %v287, 0.0
      %v396 = vsel %vm274, %v290, 0.0
      %v397 = vsel %vm274, %v293, 0.0
      %v398 = vsel %vm274, %v296, 0.0
      %v399 = vsel %vm274, %v299, 0.0
      %v400 = vsel %vm274, %v302, 0.0
      %v401 = vsel %vm274, %v305, 0.0
      %v402 = vsel %vm274, %v308, 0.0
      %v403 = vsel %vm274, %v311, 0.0
      %v404 = vsel %vm274, %v314, 0.0
      %v405 = vsel %vm274, %v317, 0.0
      %v406 = vsel %vm274, %v320, 0.0
      %v407 = vsel %vm274, %v323, 0.0
      %vm440 = vcmask 1046528
      %v441 = vrot.slane %v374, 1
      %v442 = vrot.slane %v276, 1
      %v443 = vsel %vm440, %v441, %v442
      %v444 = vrot.slane %v391, 1
      %v445 = vsel %vm440, %v442, %v444
      %v446 = vrot.slane %v375, 1
      %v447 = vrot.slane %v279, 1
      %v448 = vsel %vm440, %v446, %v447
      %v449 = vrot.slane %v392, 1
      %v450 = vsel %vm440, %v447, %v449
      %v451 = vrot.slane %v376, 1
      %v452 = vrot.slane %v282, 1
      %v453 = vsel %vm440, %v451, %v452
      %v454 = vrot.slane %v393, 1
      %v455 = vsel %vm440, %v452, %v454
      %v456 = vrot.slane %v377, 1
      %v457 = vrot.slane %v285, 1
      %v458 = vsel %vm440, %v456, %v457
      %v459 = vrot.slane %v394, 1
      %v460 = vsel %vm440, %v457, %v459
      %v461 = vrot.slane %v378, 1
      %v462 = vrot.slane %v288, 1
      %v463 = vsel %vm440, %v461, %v462
      %v464 = vrot.slane %v395, 1
      %v465 = vsel %vm440, %v462, %v464
      %v466 = vrot.slane %v379, 1
      %v467 = vrot.slane %v291, 1
      %v468 = vsel %vm440, %v466, %v467
      %v469 = vrot.slane %v396, 1
      %v470 = vsel %vm440, %v467, %v469
      %v471 = vrot.slane %v380, 1
      %v472 = vrot.slane %v294, 1
      %v473 = vsel %vm440, %v471, %v472
      %v474 = vrot.slane %v397, 1
      %v475 = vsel %vm440, %v472, %v474
      %v476 = vrot.slane %v381, 1
      %v477 = vrot.slane %v297, 1
      %v478 = vsel %vm440, %v476, %v477
      %v479 = vrot.slane %v398, 1
      %v480 = vsel %vm440, %v477, %v479
      %v481 = vrot.slane %v382, 1
      %v482 = vrot.slane %v300, 1
      %v483 = vsel %vm440, %v481, %v482
      %v484 = vrot.slane %v399, 1
      %v485 = vsel %vm440, %v482, %v484
      %v486 = vrot.slane %v383, 1
      %v487 = vrot.slane %v303, 1
      %v488 = vsel %vm440, %v486, %v487
      %v489 = vrot.slane %v400, 1
      %v490 = vsel %vm440, %v487, %v489
      %v491 = vrot.slane %v384, 1
      %v492 = vrot.slane %v306, 1
      %v493 = vsel %vm440, %v491, %v492
      %v494 = vrot.slane %v401, 1
      %v495 = vsel %vm440, %v492, %v494
      %v496 = vrot.slane %v385, 1
      %v497 = vrot.slane %v309, 1
      %v498 = vsel %vm440, %v496, %v497
      %v499 = vrot.slane %v402, 1
      %v500 = vsel %vm440, %v497, %v499
      %v501 = vrot.slane %v386, 1
      %v502 = vrot.slane %v312, 1
      %v503 = vsel %vm440, %v501, %v502
      %v504 = vrot.slane %v403, 1
      %v505 = vsel %vm440, %v502, %v504
      %v506 = vrot.slane %v387, 1
      %v507 = vrot.slane %v315, 1
      %v508 = vsel %vm440, %v506, %v507
      %v509 = vrot.slane %v404, 1
      %v510 = vsel %vm440, %v507, %v509
      %v511 = vrot.slane %v388, 1
      %v512 = vrot.slane %v318, 1
      %v513 = vsel %vm440, %v511, %v512
      %v514 = vrot.slane %v405, 1
      %v515 = vsel %vm440, %v512, %v514
      %v516 = vrot.slane %v389, 1
      %v517 = vrot.slane %v321, 1
      %v518 = vsel %vm440, %v516, %v517
      %v519 = vrot.slane %v406, 1
      %v520 = vsel %vm440, %v517, %v519
      %521 = vrot.lane.b32.xlu0 %v443, 4
      %v522 = vpop.permute.xlu0 %521
      %523 = vrot.lane.b32.xlu0 %v445, 4
      %v524 = vpop.permute.xlu0 %523
      %525 = vrot.lane.b32.xlu0 %v448, 4
      %v526 = vpop.permute.xlu0 %525
      %527 = vrot.lane.b32.xlu0 %v450, 4
      %v528 = vpop.permute.xlu0 %527
      %529 = vrot.lane.b32.xlu0 %v453, 4
      %v530 = vpop.permute.xlu0 %529
      %531 = vrot.lane.b32.xlu0 %v455, 4
      %v532 = vpop.permute.xlu0 %531
      %533 = vrot.lane.b32.xlu0 %v458, 4
      %v534 = vpop.permute.xlu0 %533
      %535 = vrot.lane.b32.xlu0 %v460, 4
      %v536 = vpop.permute.xlu0 %535
      %537 = vrot.lane.b32.xlu0 %v463, 4
      %v538 = vpop.permute.xlu0 %537
      %539 = vrot.lane.b32.xlu0 %v465, 4
      %v540 = vpop.permute.xlu0 %539
      %541 = vrot.lane.b32.xlu0 %v468, 4
      %v542 = vpop.permute.xlu0 %541
      %543 = vrot.lane.b32.xlu0 %v470, 4
      %v544 = vpop.permute.xlu0 %543
      %545 = vrot.lane.b32.xlu0 %v473, 4
      %v546 = vpop.permute.xlu0 %545
      %547 = vrot.lane.b32.xlu0 %v475, 4
      %v548 = vpop.permute.xlu0 %547
      %549 = vrot.lane.b32.xlu0 %v478, 4
      %v550 = vpop.permute.xlu0 %549
      %551 = vrot.lane.b32.xlu0 %v480, 4
      %v552 = vpop.permute.xlu0 %551
      %553 = vrot.lane.b32.xlu0 %v483, 4
      %v554 = vpop.permute.xlu0 %553
      %555 = vrot.lane.b32.xlu0 %v485, 4
      %v556 = vpop.permute.xlu0 %555
      %557 = vrot.lane.b32.xlu0 %v488, 4
      %v558 = vpop.permute.xlu0 %557
      %559 = vrot.lane.b32.xlu0 %v490, 4
      %v560 = vpop.permute.xlu0 %559
      %561 = vrot.lane.b32.xlu0 %v493, 4
      %v562 = vpop.permute.xlu0 %561
      %563 = vrot.lane.b32.xlu0 %v495, 4
      %v564 = vpop.permute.xlu0 %563
      %565 = vrot.lane.b32.xlu0 %v498, 4
      %v566 = vpop.permute.xlu0 %565
      %567 = vrot.lane.b32.xlu0 %v500, 4
      %v568 = vpop.permute.xlu0 %567
      %569 = vrot.lane.b32.xlu0 %v503, 4
      %v570 = vpop.permute.xlu0 %569
      %571 = vrot.lane.b32.xlu0 %v505, 4
      %v572 = vpop.permute.xlu0 %571
      %573 = vrot.lane.b32.xlu0 %v508, 4
      %v574 = vpop.permute.xlu0 %573
      %575 = vrot.lane.b32.xlu0 %v510, 4
      %v576 = vpop.permute.xlu0 %575
      %577 = vrot.lane.b32.xlu0 %v513, 4
      %v578 = vpop.permute.xlu0 %577
      %579 = vrot.lane.b32.xlu0 %v515, 4
      %v580 = vpop.permute.xlu0 %579
      %581 = vrot.lane.b32.xlu0 %v518, 4
      %v582 = vpop.permute.xlu0 %581
      %583 = vrot.lane.b32.xlu0 %v520, 4
      %v584 = vpop.permute.xlu0 %583
      %vm617 = vcmask 1045504
      %v618 = vrot.slane %v374, 2
      %v619 = vrot.slane %v276, 2
      %v620 = vsel %vm617, %v618, %v619
      %v621 = vrot.slane %v391, 2
      %v622 = vsel %vm617, %v619, %v621
      %v623 = vrot.slane %v375, 2
      %v624 = vrot.slane %v279, 2
      %v625 = vsel %vm617, %v623, %v624
      %v626 = vrot.slane %v392, 2
      %v627 = vsel %vm617, %v624, %v626
      %v628 = vrot.slane %v376, 2
      %v629 = vrot.slane %v282, 2
      %v630 = vsel %vm617, %v628, %v629
      %v631 = vrot.slane %v393, 2
      %v632 = vsel %vm617, %v629, %v631
      %v633 = vrot.slane %v377, 2
      %v634 = vrot.slane %v285, 2
      %v635 = vsel %vm617, %v633, %v634
      %v636 = vrot.slane %v394, 2
      %v637 = vsel %vm617, %v634, %v636
      %v638 = vrot.slane %v378, 2
      %v639 = vrot.slane %v288, 2
      %v640 = vsel %vm617, %v638, %v639
      %v641 = vrot.slane %v395, 2
      %v642 = vsel %vm617, %v639, %v641
      %v643 = vrot.slane %v379, 2
      %v644 = vrot.slane %v291, 2
      %v645 = vsel %vm617, %v643, %v644
      %v646 = vrot.slane %v396, 2
      %v647 = vsel %vm617, %v644, %v646
      %v648 = vrot.slane %v380, 2
      %v649 = vrot.slane %v294, 2
      %v650 = vsel %vm617, %v648, %v649
      %v651 = vrot.slane %v397, 2
      %v652 = vsel %vm617, %v649, %v651
      %v653 = vrot.slane %v381, 2
      %v654 = vrot.slane %v297, 2
      %v655 = vsel %vm617, %v653, %v654
      %v656 = vrot.slane %v398, 2
      %v657 = vsel %vm617, %v654, %v656
      %v658 = vrot.slane %v382, 2
      %v659 = vrot.slane %v300, 2
      %v660 = vsel %vm617, %v658, %v659
      %v661 = vrot.slane %v399, 2
      %v662 = vsel %vm617, %v659, %v661
      %v663 = vrot.slane %v383, 2
      %v664 = vrot.slane %v303, 2
      %v665 = vsel %vm617, %v663, %v664
      %v666 = vrot.slane %v400, 2
      %v667 = vsel %vm617, %v664, %v666
      %v668 = vrot.slane %v384, 2
      %v669 = vrot.slane %v306, 2
      %v670 = vsel %vm617, %v668, %v669
      %v671 = vrot.slane %v401, 2
      %v672 = vsel %vm617, %v669, %v671
      %v673 = vrot.slane %v385, 2
      %v674 = vrot.slane %v309, 2
      %v675 = vsel %vm617, %v673, %v674
      %v676 = vrot.slane %v402, 2
      %v677 = vsel %vm617, %v674, %v676
      %v678 = vrot.slane %v386, 2
      %v679 = vrot.slane %v312, 2
      %v680 = vsel %vm617, %v678, %v679
      %v681 = vrot.slane %v403, 2
      %v682 = vsel %vm617, %v679, %v681
      %v683 = vrot.slane %v387, 2
      %v684 = vrot.slane %v315, 2
      %v685 = vsel %vm617, %v683, %v684
      %v686 = vrot.slane %v404, 2
      %v687 = vsel %vm617, %v684, %v686
      %v688 = vrot.slane %v388, 2
      %v689 = vrot.slane %v318, 2
      %v690 = vsel %vm617, %v688, %v689
      %v691 = vrot.slane %v405, 2
      %v692 = vsel %vm617, %v689, %v691
      %v693 = vrot.slane %v389, 2
      %v694 = vrot.slane %v321, 2
      %v695 = vsel %vm617, %v693, %v694
      %v696 = vrot.slane %v406, 2
      %v697 = vsel %vm617, %v694, %v696
      %698 = vrot.lane.b32.xlu0 %v620, 8
      %v699 = vpop.permute.xlu0 %698
      %700 = vrot.lane.b32.xlu0 %v622, 8
      %v701 = vpop.permute.xlu0 %700
      %702 = vrot.lane.b32.xlu0 %v625, 8
      %v703 = vpop.permute.xlu0 %702
      %704 = vrot.lane.b32.xlu0 %v627, 8
      %v705 = vpop.permute.xlu0 %704
      %706 = vrot.lane.b32.xlu0 %v630, 8
      %v707 = vpop.permute.xlu0 %706
      %708 = vrot.lane.b32.xlu0 %v632, 8
      %v709 = vpop.permute.xlu0 %708
      %710 = vrot.lane.b32.xlu0 %v635, 8
      %v711 = vpop.permute.xlu0 %710
      %712 = vrot.lane.b32.xlu0 %v637, 8
      %v713 = vpop.permute.xlu0 %712
      %714 = vrot.lane.b32.xlu0 %v640, 8
      %v715 = vpop.permute.xlu0 %714
      %716 = vrot.lane.b32.xlu0 %v642, 8
      %v717 = vpop.permute.xlu0 %716
      %718 = vrot.lane.b32.xlu0 %v645, 8
      %v719 = vpop.permute.xlu0 %718
      %720 = vrot.lane.b32.xlu0 %v647, 8
      %v721 = vpop.permute.xlu0 %720
      %722 = vrot.lane.b32.xlu0 %v650, 8
      %v723 = vpop.permute.xlu0 %722
      %724 = vrot.lane.b32.xlu0 %v652, 8
      %v725 = vpop.permute.xlu0 %724
      %726 = vrot.lane.b32.xlu0 %v655, 8
      %v727 = vpop.permute.xlu0 %726
      %728 = vrot.lane.b32.xlu0 %v657, 8
      %v729 = vpop.permute.xlu0 %728
      %730 = vrot.lane.b32.xlu0 %v660, 8
      %v731 = vpop.permute.xlu0 %730
      %732 = vrot.lane.b32.xlu0 %v662, 8
      %v733 = vpop.permute.xlu0 %732
      %734 = vrot.lane.b32.xlu0 %v665, 8
      %v735 = vpop.permute.xlu0 %734
      %736 = vrot.lane.b32.xlu0 %v667, 8
      %v737 = vpop.permute.xlu0 %736
      %738 = vrot.lane.b32.xlu0 %v670, 8
      %v739 = vpop.permute.xlu0 %738
      %740 = vrot.lane.b32.xlu0 %v672, 8
      %v741 = vpop.permute.xlu0 %740
      %742 = vrot.lane.b32.xlu0 %v675, 8
      %v743 = vpop.permute.xlu0 %742
      %744 = vrot.lane.b32.xlu0 %v677, 8
      %v745 = vpop.permute.xlu0 %744
      %746 = vrot.lane.b32.xlu0 %v680, 8
      %v747 = vpop.permute.xlu0 %746
      %748 = vrot.lane.b32.xlu0 %v682, 8
      %v749 = vpop.permute.xlu0 %748
      %750 = vrot.lane.b32.xlu0 %v685, 8
      %v751 = vpop.permute.xlu0 %750
      %752 = vrot.lane.b32.xlu0 %v687, 8
      %v753 = vpop.permute.xlu0 %752
      %754 = vrot.lane.b32.xlu0 %v690, 8
      %v755 = vpop.permute.xlu0 %754
      %756 = vrot.lane.b32.xlu0 %v692, 8
      %v757 = vpop.permute.xlu0 %756
      %758 = vrot.lane.b32.xlu0 %v695, 8
      %v759 = vpop.permute.xlu0 %758
      %760 = vrot.lane.b32.xlu0 %v697, 8
      %v761 = vpop.permute.xlu0 %760
      %795 = vrot.lane.b32.xlu0 %v375, 12
      %v796 = vpop.permute.xlu0 %795
      %797 = vrot.lane.b32.xlu0 %v279, 12
      %v798 = vpop.permute.xlu0 %797
      %799 = vrot.lane.b32.xlu0 %v376, 12
      %v800 = vpop.permute.xlu0 %799
      %801 = vrot.lane.b32.xlu0 %v282, 12
      %v802 = vpop.permute.xlu0 %801
      %803 = vrot.lane.b32.xlu0 %v377, 12
      %v804 = vpop.permute.xlu0 %803
      %805 = vrot.lane.b32.xlu0 %v285, 12
      %v806 = vpop.permute.xlu0 %805
      %807 = vrot.lane.b32.xlu0 %v378, 12
      %v808 = vpop.permute.xlu0 %807
      %809 = vrot.lane.b32.xlu0 %v288, 12
      %v810 = vpop.permute.xlu0 %809
      %811 = vrot.lane.b32.xlu0 %v379, 12
      %v812 = vpop.permute.xlu0 %811
      %813 = vrot.lane.b32.xlu0 %v291, 12
      %v814 = vpop.permute.xlu0 %813
      %815 = vrot.lane.b32.xlu0 %v380, 12
      %v816 = vpop.permute.xlu0 %815
      %817 = vrot.lane.b32.xlu0 %v294, 12
      %v818 = vpop.permute.xlu0 %817
      %819 = vrot.lane.b32.xlu0 %v381, 12
      %v820 = vpop.permute.xlu0 %819
      %821 = vrot.lane.b32.xlu0 %v297, 12
      %v822 = vpop.permute.xlu0 %821
      %823 = vrot.lane.b32.xlu0 %v382, 12
      %v824 = vpop.permute.xlu0 %823
      %825 = vrot.lane.b32.xlu0 %v300, 12
      %v826 = vpop.permute.xlu0 %825
      %827 = vrot.lane.b32.xlu0 %v383, 12
      %v828 = vpop.permute.xlu0 %827
      %829 = vrot.lane.b32.xlu0 %v303, 12
      %v830 = vpop.permute.xlu0 %829
      %831 = vrot.lane.b32.xlu0 %v384, 12
      %v832 = vpop.permute.xlu0 %831
      %833 = vrot.lane.b32.xlu0 %v306, 12
      %v834 = vpop.permute.xlu0 %833
      %835 = vrot.lane.b32.xlu0 %v385, 12
      %v836 = vpop.permute.xlu0 %835
      %837 = vrot.lane.b32.xlu0 %v309, 12
      %v838 = vpop.permute.xlu0 %837
      %839 = vrot.lane.b32.xlu0 %v386, 12
      %v840 = vpop.permute.xlu0 %839
      %841 = vrot.lane.b32.xlu0 %v312, 12
      %v842 = vpop.permute.xlu0 %841
      %843 = vrot.lane.b32.xlu0 %v387, 12
      %v844 = vpop.permute.xlu0 %843
      %845 = vrot.lane.b32.xlu0 %v315, 12
      %v846 = vpop.permute.xlu0 %845
      %847 = vrot.lane.b32.xlu0 %v388, 12
      %v848 = vpop.permute.xlu0 %847
      %849 = vrot.lane.b32.xlu0 %v318, 12
      %v850 = vpop.permute.xlu0 %849
      %851 = vrot.lane.b32.xlu0 %v389, 12
      %v852 = vpop.permute.xlu0 %851
      %853 = vrot.lane.b32.xlu0 %v321, 12
      %v854 = vpop.permute.xlu0 %853
      %855 = vrot.lane.b32.xlu0 %v390, 12
      %v856 = vpop.permute.xlu0 %855
      %857 = vrot.lane.b32.xlu0 %v324, 12
      %v858 = vpop.permute.xlu0 %857
      %v892 = vrot.slane %v390, 1
      %v893 = vrot.slane %v324, 1
      %v894 = vsel %vm440, %v892, %v893
      %v895 = vrot.slane %v407, 1
      %v896 = vsel %vm440, %v893, %v895
      %897 = vrot.lane.b32.xlu0 %v448, 16
      %v898 = vpop.permute.xlu0 %897
      %899 = vrot.lane.b32.xlu0 %v450, 16
      %v900 = vpop.permute.xlu0 %899
      %901 = vrot.lane.b32.xlu0 %v453, 16
      %v902 = vpop.permute.xlu0 %901
      %903 = vrot.lane.b32.xlu0 %v455, 16
      %v904 = vpop.permute.xlu0 %903
      %905 = vrot.lane.b32.xlu0 %v458, 16
      %v906 = vpop.permute.xlu0 %905
      %907 = vrot.lane.b32.xlu0 %v460, 16
      %v908 = vpop.permute.xlu0 %907
      %909 = vrot.lane.b32.xlu0 %v463, 16
      %v910 = vpop.permute.xlu0 %909
      %911 = vrot.lane.b32.xlu0 %v465, 16
      %v912 = vpop.permute.xlu0 %911
      %913 = vrot.lane.b32.xlu0 %v468, 16
      %v914 = vpop.permute.xlu0 %913
      %915 = vrot.lane.b32.xlu0 %v470, 16
      %v916 = vpop.permute.xlu0 %915
      %917 = vrot.lane.b32.xlu0 %v473, 16
      %v918 = vpop.permute.xlu0 %917
      %919 = vrot.lane.b32.xlu0 %v475, 16
      %v920 = vpop.permute.xlu0 %919
      %921 = vrot.lane.b32.xlu0 %v478, 16
      %v922 = vpop.permute.xlu0 %921
      %923 = vrot.lane.b32.xlu0 %v480, 16
      %v924 = vpop.permute.xlu0 %923
      %925 = vrot.lane.b32.xlu0 %v483, 16
      %v926 = vpop.permute.xlu0 %925
      %927 = vrot.lane.b32.xlu0 %v485, 16
      %v928 = vpop.permute.xlu0 %927
      %929 = vrot.lane.b32.xlu0 %v488, 16
      %v930 = vpop.permute.xlu0 %929
      %931 = vrot.lane.b32.xlu0 %v490, 16
      %v932 = vpop.permute.xlu0 %931
      %933 = vrot.lane.b32.xlu0 %v493, 16
      %v934 = vpop.permute.xlu0 %933
      %935 = vrot.lane.b32.xlu0 %v495, 16
      %v936 = vpop.permute.xlu0 %935
      %937 = vrot.lane.b32.xlu0 %v498, 16
      %v938 = vpop.permute.xlu0 %937
      %939 = vrot.lane.b32.xlu0 %v500, 16
      %v940 = vpop.permute.xlu0 %939
      %941 = vrot.lane.b32.xlu0 %v503, 16
      %v942 = vpop.permute.xlu0 %941
      %943 = vrot.lane.b32.xlu0 %v505, 16
      %v944 = vpop.permute.xlu0 %943
      %945 = vrot.lane.b32.xlu0 %v508, 16
      %v946 = vpop.permute.xlu0 %945
      %947 = vrot.lane.b32.xlu0 %v510, 16
      %v948 = vpop.permute.xlu0 %947
      %949 = vrot.lane.b32.xlu0 %v513, 16
      %v950 = vpop.permute.xlu0 %949
      %951 = vrot.lane.b32.xlu0 %v515, 16
      %v952 = vpop.permute.xlu0 %951
      %953 = vrot.lane.b32.xlu0 %v518, 16
      %v954 = vpop.permute.xlu0 %953
      %955 = vrot.lane.b32.xlu0 %v520, 16
      %v956 = vpop.permute.xlu0 %955
      %957 = vrot.lane.b32.xlu0 %v894, 16
      %v958 = vpop.permute.xlu0 %957
      %959 = vrot.lane.b32.xlu0 %v896, 16
      %v960 = vpop.permute.xlu0 %959
      %v993 = vrot.slane %v390, 2
      %v994 = vrot.slane %v324, 2
      %v995 = vsel %vm617, %v993, %v994
      %v996 = vrot.slane %v407, 2
      %v997 = vsel %vm617, %v994, %v996
      %998 = vrot.lane.b32.xlu0 %v625, 20
      %v999 = vpop.permute.xlu0 %998
      %1000 = vrot.lane.b32.xlu0 %v627, 20
      %v1001 = vpop.permute.xlu0 %1000
      %1002 = vrot.lane.b32.xlu0 %v630, 20
      %v1003 = vpop.permute.xlu0 %1002
      %1004 = vrot.lane.b32.xlu0 %v632, 20
      %v1005 = vpop.permute.xlu0 %1004
      %1006 = vrot.lane.b32.xlu0 %v635, 20
      %v1007 = vpop.permute.xlu0 %1006
      %1008 = vrot.lane.b32.xlu0 %v637, 20
      %v1009 = vpop.permute.xlu0 %1008
      %1010 = vrot.lane.b32.xlu0 %v640, 20
      %v1011 = vpop.permute.xlu0 %1010
      %1012 = vrot.lane.b32.xlu0 %v642, 20
      %v1013 = vpop.permute.xlu0 %1012
      %1014 = vrot.lane.b32.xlu0 %v645, 20
      %v1015 = vpop.permute.xlu0 %1014
      %1016 = vrot.lane.b32.xlu0 %v647, 20
      %v1017 = vpop.permute.xlu0 %1016
      %1018 = vrot.lane.b32.xlu0 %v650, 20
      %v1019 = vpop.permute.xlu0 %1018
      %1020 = vrot.lane.b32.xlu0 %v652, 20
      %v1021 = vpop.permute.xlu0 %1020
      %1022 = vrot.lane.b32.xlu0 %v655, 20
      %v1023 = vpop.permute.xlu0 %1022
      %1024 = vrot.lane.b32.xlu0 %v657, 20
      %v1025 = vpop.permute.xlu0 %1024
      %1026 = vrot.lane.b32.xlu0 %v660, 20
      %v1027 = vpop.permute.xlu0 %1026
      %1028 = vrot.lane.b32.xlu0 %v662, 20
      %v1029 = vpop.permute.xlu0 %1028
      %1030 = vrot.lane.b32.xlu0 %v665, 20
      %v1031 = vpop.permute.xlu0 %1030
      %1032 = vrot.lane.b32.xlu0 %v667, 20
      %v1033 = vpop.permute.xlu0 %1032
      %1034 = vrot.lane.b32.xlu0 %v670, 20
      %v1035 = vpop.permute.xlu0 %1034
      %1036 = vrot.lane.b32.xlu0 %v672, 20
      %v1037 = vpop.permute.xlu0 %1036
      %1038 = vrot.lane.b32.xlu0 %v675, 20
      %v1039 = vpop.permute.xlu0 %1038
      %1040 = vrot.lane.b32.xlu0 %v677, 20
      %v1041 = vpop.permute.xlu0 %1040
      %1042 = vrot.lane.b32.xlu0 %v680, 20
      %v1043 = vpop.permute.xlu0 %1042
      %1044 = vrot.lane.b32.xlu0 %v682, 20
      %v1045 = vpop.permute.xlu0 %1044
      %1046 = vrot.lane.b32.xlu0 %v685, 20
      %v1047 = vpop.permute.xlu0 %1046
      %1048 = vrot.lane.b32.xlu0 %v687, 20
      %v1049 = vpop.permute.xlu0 %1048
      %1050 = vrot.lane.b32.xlu0 %v690, 20
      %v1051 = vpop.permute.xlu0 %1050
      %1052 = vrot.lane.b32.xlu0 %v692, 20
      %v1053 = vpop.permute.xlu0 %1052
      %1054 = vrot.lane.b32.xlu0 %v695, 20
      %v1055 = vpop.permute.xlu0 %1054
      %1056 = vrot.lane.b32.xlu0 %v697, 20
      %v1057 = vpop.permute.xlu0 %1056
      %1058 = vrot.lane.b32.xlu0 %v995, 20
      %v1059 = vpop.permute.xlu0 %1058
      %1060 = vrot.lane.b32.xlu0 %v997, 20
      %v1061 = vpop.permute.xlu0 %1060
      %1094 = vrot.lane.b32.xlu0 %v376, 24
      %v1095 = vpop.permute.xlu0 %1094
      %1096 = vrot.lane.b32.xlu0 %v282, 24
      %v1097 = vpop.permute.xlu0 %1096
      %1098 = vrot.lane.b32.xlu0 %v377, 24
      %v1099 = vpop.permute.xlu0 %1098
      %1100 = vrot.lane.b32.xlu0 %v285, 24
      %v1101 = vpop.permute.xlu0 %1100
      %1102 = vrot.lane.b32.xlu0 %v378, 24
      %v1103 = vpop.permute.xlu0 %1102
      %1104 = vrot.lane.b32.xlu0 %v288, 24
      %v1105 = vpop.permute.xlu0 %1104
      %1106 = vrot.lane.b32.xlu0 %v379, 24
      %v1107 = vpop.permute.xlu0 %1106
      %1108 = vrot.lane.b32.xlu0 %v291, 24
      %v1109 = vpop.permute.xlu0 %1108
      %1110 = vrot.lane.b32.xlu0 %v380, 24
      %v1111 = vpop.permute.xlu0 %1110
      %1112 = vrot.lane.b32.xlu0 %v294, 24
      %v1113 = vpop.permute.xlu0 %1112
      %1114 = vrot.lane.b32.xlu0 %v381, 24
      %v1115 = vpop.permute.xlu0 %1114
      %1116 = vrot.lane.b32.xlu0 %v297, 24
      %v1117 = vpop.permute.xlu0 %1116
      %1118 = vrot.lane.b32.xlu0 %v382, 24
      %v1119 = vpop.permute.xlu0 %1118
      %1120 = vrot.lane.b32.xlu0 %v300, 24
      %v1121 = vpop.permute.xlu0 %1120
      %1122 = vrot.lane.b32.xlu0 %v383, 24
      %v1123 = vpop.permute.xlu0 %1122
      %1124 = vrot.lane.b32.xlu0 %v303, 24
      %v1125 = vpop.permute.xlu0 %1124
      %1126 = vrot.lane.b32.xlu0 %v384, 24
      %v1127 = vpop.permute.xlu0 %1126
      %1128 = vrot.lane.b32.xlu0 %v306, 24
      %v1129 = vpop.permute.xlu0 %1128
      %1130 = vrot.lane.b32.xlu0 %v385, 24
      %v1131 = vpop.permute.xlu0 %1130
      %1132 = vrot.lane.b32.xlu0 %v309, 24
      %v1133 = vpop.permute.xlu0 %1132
      %1134 = vrot.lane.b32.xlu0 %v386, 24
      %v1135 = vpop.permute.xlu0 %1134
      %1136 = vrot.lane.b32.xlu0 %v312, 24
      %v1137 = vpop.permute.xlu0 %1136
      %1138 = vrot.lane.b32.xlu0 %v387, 24
      %v1139 = vpop.permute.xlu0 %1138
      %1140 = vrot.lane.b32.xlu0 %v315, 24
      %v1141 = vpop.permute.xlu0 %1140
      %1142 = vrot.lane.b32.xlu0 %v388, 24
      %v1143 = vpop.permute.xlu0 %1142
      %1144 = vrot.lane.b32.xlu0 %v318, 24
      %v1145 = vpop.permute.xlu0 %1144
      %1146 = vrot.lane.b32.xlu0 %v389, 24
      %v1147 = vpop.permute.xlu0 %1146
      %1148 = vrot.lane.b32.xlu0 %v321, 24
      %v1149 = vpop.permute.xlu0 %1148
      %1150 = vrot.lane.b32.xlu0 %v390, 24
      %v1151 = vpop.permute.xlu0 %1150
      %1152 = vrot.lane.b32.xlu0 %v324, 24
      %v1153 = vpop.permute.xlu0 %1152
      %1154 = vrot.lane.b32.xlu0 %v374, 24
      %v1155 = vpop.permute.xlu0 %1154
      %1156 = vrot.lane.b32.xlu0 %v276, 24
      %v1157 = vpop.permute.xlu0 %1156
      %1190 = vrot.lane.b32.xlu0 %v453, 28
      %v1191 = vpop.permute.xlu0 %1190
      %1192 = vrot.lane.b32.xlu0 %v455, 28
      %v1193 = vpop.permute.xlu0 %1192
      %1194 = vrot.lane.b32.xlu0 %v458, 28
      %v1195 = vpop.permute.xlu0 %1194
      %1196 = vrot.lane.b32.xlu0 %v460, 28
      %v1197 = vpop.permute.xlu0 %1196
      %1198 = vrot.lane.b32.xlu0 %v463, 28
      %v1199 = vpop.permute.xlu0 %1198
      %1200 = vrot.lane.b32.xlu0 %v465, 28
      %v1201 = vpop.permute.xlu0 %1200
      %1202 = vrot.lane.b32.xlu0 %v468, 28
      %v1203 = vpop.permute.xlu0 %1202
      %1204 = vrot.lane.b32.xlu0 %v470, 28
      %v1205 = vpop.permute.xlu0 %1204
      %1206 = vrot.lane.b32.xlu0 %v473, 28
      %v1207 = vpop.permute.xlu0 %1206
      %1208 = vrot.lane.b32.xlu0 %v475, 28
      %v1209 = vpop.permute.xlu0 %1208
      %1210 = vrot.lane.b32.xlu0 %v478, 28
      %v1211 = vpop.permute.xlu0 %1210
      %1212 = vrot.lane.b32.xlu0 %v480, 28
      %v1213 = vpop.permute.xlu0 %1212
      %1214 = vrot.lane.b32.xlu0 %v483, 28
      %v1215 = vpop.permute.xlu0 %1214
      %1216 = vrot.lane.b32.xlu0 %v485, 28
      %v1217 = vpop.permute.xlu0 %1216
      %1218 = vrot.lane.b32.xlu0 %v488, 28
      %v1219 = vpop.permute.xlu0 %1218
      %1220 = vrot.lane.b32.xlu0 %v490, 28
      %v1221 = vpop.permute.xlu0 %1220
      %1222 = vrot.lane.b32.xlu0 %v493, 28
      %v1223 = vpop.permute.xlu0 %1222
      %1224 = vrot.lane.b32.xlu0 %v495, 28
      %v1225 = vpop.permute.xlu0 %1224
      %1226 = vrot.lane.b32.xlu0 %v498, 28
      %v1227 = vpop.permute.xlu0 %1226
      %1228 = vrot.lane.b32.xlu0 %v500, 28
      %v1229 = vpop.permute.xlu0 %1228
      %1230 = vrot.lane.b32.xlu0 %v503, 28
      %v1231 = vpop.permute.xlu0 %1230
      %1232 = vrot.lane.b32.xlu0 %v505, 28
      %v1233 = vpop.permute.xlu0 %1232
      %1234 = vrot.lane.b32.xlu0 %v508, 28
      %v1235 = vpop.permute.xlu0 %1234
      %1236 = vrot.lane.b32.xlu0 %v510, 28
      %v1237 = vpop.permute.xlu0 %1236
      %1238 = vrot.lane.b32.xlu0 %v513, 28
      %v1239 = vpop.permute.xlu0 %1238
      %1240 = vrot.lane.b32.xlu0 %v515, 28
      %v1241 = vpop.permute.xlu0 %1240
      %1242 = vrot.lane.b32.xlu0 %v518, 28
      %v1243 = vpop.permute.xlu0 %1242
      %1244 = vrot.lane.b32.xlu0 %v520, 28
      %v1245 = vpop.permute.xlu0 %1244
      %1246 = vrot.lane.b32.xlu0 %v894, 28
      %v1247 = vpop.permute.xlu0 %1246
      %1248 = vrot.lane.b32.xlu0 %v896, 28
      %v1249 = vpop.permute.xlu0 %1248
      %1250 = vrot.lane.b32.xlu0 %v443, 28
      %v1251 = vpop.permute.xlu0 %1250
      %1252 = vrot.lane.b32.xlu0 %v445, 28
      %v1253 = vpop.permute.xlu0 %1252
      %1286 = vrot.lane.b32.xlu0 %v630, 32
      %v1287 = vpop.permute.xlu0 %1286
      %1288 = vrot.lane.b32.xlu0 %v632, 32
      %v1289 = vpop.permute.xlu0 %1288
      %1290 = vrot.lane.b32.xlu0 %v635, 32
      %v1291 = vpop.permute.xlu0 %1290
      %1292 = vrot.lane.b32.xlu0 %v637, 32
      %v1293 = vpop.permute.xlu0 %1292
      %1294 = vrot.lane.b32.xlu0 %v640, 32
      %v1295 = vpop.permute.xlu0 %1294
      %1296 = vrot.lane.b32.xlu0 %v642, 32
      %v1297 = vpop.permute.xlu0 %1296
      %1298 = vrot.lane.b32.xlu0 %v645, 32
      %v1299 = vpop.permute.xlu0 %1298
      %1300 = vrot.lane.b32.xlu0 %v647, 32
      %v1301 = vpop.permute.xlu0 %1300
      %1302 = vrot.lane.b32.xlu0 %v650, 32
      %v1303 = vpop.permute.xlu0 %1302
      %1304 = vrot.lane.b32.xlu0 %v652, 32
      %v1305 = vpop.permute.xlu0 %1304
      %1306 = vrot.lane.b32.xlu0 %v655, 32
      %v1307 = vpop.permute.xlu0 %1306
      %1308 = vrot.lane.b32.xlu0 %v657, 32
      %v1309 = vpop.permute.xlu0 %1308
      %1310 = vrot.lane.b32.xlu0 %v660, 32
      %v1311 = vpop.permute.xlu0 %1310
      %1312 = vrot.lane.b32.xlu0 %v662, 32
      %v1313 = vpop.permute.xlu0 %1312
      %1314 = vrot.lane.b32.xlu0 %v665, 32
      %v1315 = vpop.permute.xlu0 %1314
      %1316 = vrot.lane.b32.xlu0 %v667, 32
      %v1317 = vpop.permute.xlu0 %1316
      %1318 = vrot.lane.b32.xlu0 %v670, 32
      %v1319 = vpop.permute.xlu0 %1318
      %1320 = vrot.lane.b32.xlu0 %v672, 32
      %v1321 = vpop.permute.xlu0 %1320
      %1322 = vrot.lane.b32.xlu0 %v675, 32
      %v1323 = vpop.permute.xlu0 %1322
      %1324 = vrot.lane.b32.xlu0 %v677, 32
      %v1325 = vpop.permute.xlu0 %1324
      %1326 = vrot.lane.b32.xlu0 %v680, 32
      %v1327 = vpop.permute.xlu0 %1326
      %1328 = vrot.lane.b32.xlu0 %v682, 32
      %v1329 = vpop.permute.xlu0 %1328
      %1330 = vrot.lane.b32.xlu0 %v685, 32
      %v1331 = vpop.permute.xlu0 %1330
      %1332 = vrot.lane.b32.xlu0 %v687, 32
      %v1333 = vpop.permute.xlu0 %1332
      %1334 = vrot.lane.b32.xlu0 %v690, 32
      %v1335 = vpop.permute.xlu0 %1334
      %1336 = vrot.lane.b32.xlu0 %v692, 32
      %v1337 = vpop.permute.xlu0 %1336
      %1338 = vrot.lane.b32.xlu0 %v695, 32
      %v1339 = vpop.permute.xlu0 %1338
      %1340 = vrot.lane.b32.xlu0 %v697, 32
      %v1341 = vpop.permute.xlu0 %1340
      %1342 = vrot.lane.b32.xlu0 %v995, 32
      %v1343 = vpop.permute.xlu0 %1342
      %1344 = vrot.lane.b32.xlu0 %v997, 32
      %v1345 = vpop.permute.xlu0 %1344
      %1346 = vrot.lane.b32.xlu0 %v620, 32
      %v1347 = vpop.permute.xlu0 %1346
      %1348 = vrot.lane.b32.xlu0 %v622, 32
      %v1349 = vpop.permute.xlu0 %1348
      %vm1382 = vcmask 31744
      %v1383 = vsel %vm1382, %v374, %v522
      %v1384 = vsel %vm1382, %v276, %v524
      %v1385 = vsel %vm1382, %v375, %v526
      %v1386 = vsel %vm1382, %v279, %v528
      %v1387 = vsel %vm1382, %v376, %v530
      %v1388 = vsel %vm1382, %v282, %v532
      %v1389 = vsel %vm1382, %v377, %v534
      %v1390 = vsel %vm1382, %v285, %v536
      %v1391 = vsel %vm1382, %v378, %v538
      %v1392 = vsel %vm1382, %v288, %v540
      %v1393 = vsel %vm1382, %v379, %v542
      %v1394 = vsel %vm1382, %v291, %v544
      %v1395 = vsel %vm1382, %v380, %v546
      %v1396 = vsel %vm1382, %v294, %v548
      %v1397 = vsel %vm1382, %v381, %v550
      %v1398 = vsel %vm1382, %v297, %v552
      %v1399 = vsel %vm1382, %v382, %v554
      %v1400 = vsel %vm1382, %v300, %v556
      %v1401 = vsel %vm1382, %v383, %v558
      %v1402 = vsel %vm1382, %v303, %v560
      %v1403 = vsel %vm1382, %v384, %v562
      %v1404 = vsel %vm1382, %v306, %v564
      %v1405 = vsel %vm1382, %v385, %v566
      %v1406 = vsel %vm1382, %v309, %v568
      %v1407 = vsel %vm1382, %v386, %v570
      %v1408 = vsel %vm1382, %v312, %v572
      %v1409 = vsel %vm1382, %v387, %v574
      %v1410 = vsel %vm1382, %v315, %v576
      %v1411 = vsel %vm1382, %v388, %v578
      %v1412 = vsel %vm1382, %v318, %v580
      %v1413 = vsel %vm1382, %v389, %v582
      %v1414 = vsel %vm1382, %v321, %v584
      %vm1415 = vcmask 64512
      %v1416 = vsel %vm1415, %v1383, %v699
      %v1417 = vsel %vm1415, %v1384, %v701
      %v1418 = vsel %vm1415, %v1385, %v703
      %v1419 = vsel %vm1415, %v1386, %v705
      %v1420 = vsel %vm1415, %v1387, %v707
      %v1421 = vsel %vm1415, %v1388, %v709
      %v1422 = vsel %vm1415, %v1389, %v711
      %v1423 = vsel %vm1415, %v1390, %v713
      %v1424 = vsel %vm1415, %v1391, %v715
      %v1425 = vsel %vm1415, %v1392, %v717
      %v1426 = vsel %vm1415, %v1393, %v719
      %v1427 = vsel %vm1415, %v1394, %v721
      %v1428 = vsel %vm1415, %v1395, %v723
      %v1429 = vsel %vm1415, %v1396, %v725
      %v1430 = vsel %vm1415, %v1397, %v727
      %v1431 = vsel %vm1415, %v1398, %v729
      %v1432 = vsel %vm1415, %v1399, %v731
      %v1433 = vsel %vm1415, %v1400, %v733
      %v1434 = vsel %vm1415, %v1401, %v735
      %v1435 = vsel %vm1415, %v1402, %v737
      %v1436 = vsel %vm1415, %v1403, %v739
      %v1437 = vsel %vm1415, %v1404, %v741
      %v1438 = vsel %vm1415, %v1405, %v743
      %v1439 = vsel %vm1415, %v1406, %v745
      %v1440 = vsel %vm1415, %v1407, %v747
      %v1441 = vsel %vm1415, %v1408, %v749
      %v1442 = vsel %vm1415, %v1409, %v751
      %v1443 = vsel %vm1415, %v1410, %v753
      %v1444 = vsel %vm1415, %v1411, %v755
      %v1445 = vsel %vm1415, %v1412, %v757
      %v1446 = vsel %vm1415, %v1413, %v759
      %v1447 = vsel %vm1415, %v1414, %v761
      %vm1448 = vcmask 97280
      %v1449 = vsel %vm1448, %v1416, %v796
      %v1450 = vsel %vm1448, %v1417, %v798
      %v1451 = vsel %vm1448, %v1418, %v800
      %v1452 = vsel %vm1448, %v1419, %v802
      %v1453 = vsel %vm1448, %v1420, %v804
      %v1454 = vsel %vm1448, %v1421, %v806
      %v1455 = vsel %vm1448, %v1422, %v808
      %v1456 = vsel %vm1448, %v1423, %v810
      %v1457 = vsel %vm1448, %v1424, %v812
      %v1458 = vsel %vm1448, %v1425, %v814
      %v1459 = vsel %vm1448, %v1426, %v816
      %v1460 = vsel %vm1448, %v1427, %v818
      %v1461 = vsel %vm1448, %v1428, %v820
      %v1462 = vsel %vm1448, %v1429, %v822
      %v1463 = vsel %vm1448, %v1430, %v824
      %v1464 = vsel %vm1448, %v1431, %v826
      %v1465 = vsel %vm1448, %v1432, %v828
      %v1466 = vsel %vm1448, %v1433, %v830
      %v1467 = vsel %vm1448, %v1434, %v832
      %v1468 = vsel %vm1448, %v1435, %v834
      %v1469 = vsel %vm1448, %v1436, %v836
      %v1470 = vsel %vm1448, %v1437, %v838
      %v1471 = vsel %vm1448, %v1438, %v840
      %v1472 = vsel %vm1448, %v1439, %v842
      %v1473 = vsel %vm1448, %v1440, %v844
      %v1474 = vsel %vm1448, %v1441, %v846
      %v1475 = vsel %vm1448, %v1442, %v848
      %v1476 = vsel %vm1448, %v1443, %v850
      %v1477 = vsel %vm1448, %v1444, %v852
      %v1478 = vsel %vm1448, %v1445, %v854
      %v1479 = vsel %vm1448, %v1446, %v856
      %v1480 = vsel %vm1448, %v1447, %v858
      %vm1481 = vcmask 130048
      %v1482 = vsel %vm1481, %v1449, %v898
      %v1483 = vsel %vm1481, %v1450, %v900
      %v1484 = vsel %vm1481, %v1451, %v902
      %v1485 = vsel %vm1481, %v1452, %v904
      %v1486 = vsel %vm1481, %v1453, %v906
      %v1487 = vsel %vm1481, %v1454, %v908
      %v1488 = vsel %vm1481, %v1455, %v910
      %v1489 = vsel %vm1481, %v1456, %v912
      %v1490 = vsel %vm1481, %v1457, %v914
      %v1491 = vsel %vm1481, %v1458, %v916
      %v1492 = vsel %vm1481, %v1459, %v918
      %v1493 = vsel %vm1481, %v1460, %v920
      %v1494 = vsel %vm1481, %v1461, %v922
      %v1495 = vsel %vm1481, %v1462, %v924
      %v1496 = vsel %vm1481, %v1463, %v926
      %v1497 = vsel %vm1481, %v1464, %v928
      %v1498 = vsel %vm1481, %v1465, %v930
      %v1499 = vsel %vm1481, %v1466, %v932
      %v1500 = vsel %vm1481, %v1467, %v934
      %v1501 = vsel %vm1481, %v1468, %v936
      %v1502 = vsel %vm1481, %v1469, %v938
      %v1503 = vsel %vm1481, %v1470, %v940
      %v1504 = vsel %vm1481, %v1471, %v942
      %v1505 = vsel %vm1481, %v1472, %v944
      %v1506 = vsel %vm1481, %v1473, %v946
      %v1507 = vsel %vm1481, %v1474, %v948
      %v1508 = vsel %vm1481, %v1475, %v950
      %v1509 = vsel %vm1481, %v1476, %v952
      %v1510 = vsel %vm1481, %v1477, %v954
      %v1511 = vsel %vm1481, %v1478, %v956
      %v1512 = vsel %vm1481, %v1479, %v958
      %v1513 = vsel %vm1481, %v1480, %v960
      %vm1514 = vcmask 162816
      %v1515 = vsel %vm1514, %v1482, %v999
      %v1516 = vsel %vm1514, %v1483, %v1001
      %v1517 = vsel %vm1514, %v1484, %v1003
      %v1518 = vsel %vm1514, %v1485, %v1005
      %v1519 = vsel %vm1514, %v1486, %v1007
      %v1520 = vsel %vm1514, %v1487, %v1009
      %v1521 = vsel %vm1514, %v1488, %v1011
      %v1522 = vsel %vm1514, %v1489, %v1013
      %v1523 = vsel %vm1514, %v1490, %v1015
      %v1524 = vsel %vm1514, %v1491, %v1017
      %v1525 = vsel %vm1514, %v1492, %v1019
      %v1526 = vsel %vm1514, %v1493, %v1021
      %v1527 = vsel %vm1514, %v1494, %v1023
      %v1528 = vsel %vm1514, %v1495, %v1025
      %v1529 = vsel %vm1514, %v1496, %v1027
      %v1530 = vsel %vm1514, %v1497, %v1029
      %v1531 = vsel %vm1514, %v1498, %v1031
      %v1532 = vsel %vm1514, %v1499, %v1033
      %v1533 = vsel %vm1514, %v1500, %v1035
      %v1534 = vsel %vm1514, %v1501, %v1037
      %v1535 = vsel %vm1514, %v1502, %v1039
      %v1536 = vsel %vm1514, %v1503, %v1041
      %v1537 = vsel %vm1514, %v1504, %v1043
      %v1538 = vsel %vm1514, %v1505, %v1045
      %v1539 = vsel %vm1514, %v1506, %v1047
      %v1540 = vsel %vm1514, %v1507, %v1049
      %v1541 = vsel %vm1514, %v1508, %v1051
      %v1542 = vsel %vm1514, %v1509, %v1053
      %v1543 = vsel %vm1514, %v1510, %v1055
      %v1544 = vsel %vm1514, %v1511, %v1057
      %v1545 = vsel %vm1514, %v1512, %v1059
      %v1546 = vsel %vm1514, %v1513, %v1061
      %vm1547 = vcmask 195584
      %v1548 = vsel %vm1547, %v1515, %v1095
      %v1549 = vsel %vm1547, %v1516, %v1097
      %v1550 = vsel %vm1547, %v1517, %v1099
      %v1551 = vsel %vm1547, %v1518, %v1101
      %v1552 = vsel %vm1547, %v1519, %v1103
      %v1553 = vsel %vm1547, %v1520, %v1105
      %v1554 = vsel %vm1547, %v1521, %v1107
      %v1555 = vsel %vm1547, %v1522, %v1109
      %v1556 = vsel %vm1547, %v1523, %v1111
      %v1557 = vsel %vm1547, %v1524, %v1113
      %v1558 = vsel %vm1547, %v1525, %v1115
      %v1559 = vsel %vm1547, %v1526, %v1117
      %v1560 = vsel %vm1547, %v1527, %v1119
      %v1561 = vsel %vm1547, %v1528, %v1121
      %v1562 = vsel %vm1547, %v1529, %v1123
      %v1563 = vsel %vm1547, %v1530, %v1125
      %v1564 = vsel %vm1547, %v1531, %v1127
      %v1565 = vsel %vm1547, %v1532, %v1129
      %v1566 = vsel %vm1547, %v1533, %v1131
      %v1567 = vsel %vm1547, %v1534, %v1133
      %v1568 = vsel %vm1547, %v1535, %v1135
      %v1569 = vsel %vm1547, %v1536, %v1137
      %v1570 = vsel %vm1547, %v1537, %v1139
      %v1571 = vsel %vm1547, %v1538, %v1141
      %v1572 = vsel %vm1547, %v1539, %v1143
      %v1573 = vsel %vm1547, %v1540, %v1145
      %v1574 = vsel %vm1547, %v1541, %v1147
      %v1575 = vsel %vm1547, %v1542, %v1149
      %v1576 = vsel %vm1547, %v1543, %v1151
      %v1577 = vsel %vm1547, %v1544, %v1153
      %v1578 = vsel %vm1547, %v1545, %v1155
      %v1579 = vsel %vm1547, %v1546, %v1157
      %vm1580 = vcmask 228352
      %v1581 = vsel %vm1580, %v1548, %v1191
      %v1582 = vsel %vm1580, %v1549, %v1193
      %v1583 = vsel %vm1580, %v1550, %v1195
      %v1584 = vsel %vm1580, %v1551, %v1197
      %v1585 = vsel %vm1580, %v1552, %v1199
      %v1586 = vsel %vm1580, %v1553, %v1201
      %v1587 = vsel %vm1580, %v1554, %v1203
      %v1588 = vsel %vm1580, %v1555, %v1205
      %v1589 = vsel %vm1580, %v1556, %v1207
      %v1590 = vsel %vm1580, %v1557, %v1209
      %v1591 = vsel %vm1580, %v1558, %v1211
      %v1592 = vsel %vm1580, %v1559, %v1213
      %v1593 = vsel %vm1580, %v1560, %v1215
      %v1594 = vsel %vm1580, %v1561, %v1217
      %v1595 = vsel %vm1580, %v1562, %v1219
      %v1596 = vsel %vm1580, %v1563, %v1221
      %v1597 = vsel %vm1580, %v1564, %v1223
      %v1598 = vsel %vm1580, %v1565, %v1225
      %v1599 = vsel %vm1580, %v1566, %v1227
      %v1600 = vsel %vm1580, %v1567, %v1229
      %v1601 = vsel %vm1580, %v1568, %v1231
      %v1602 = vsel %vm1580, %v1569, %v1233
      %v1603 = vsel %vm1580, %v1570, %v1235
      %v1604 = vsel %vm1580, %v1571, %v1237
      %v1605 = vsel %vm1580, %v1572, %v1239
      %v1606 = vsel %vm1580, %v1573, %v1241
      %v1607 = vsel %vm1580, %v1574, %v1243
      %v1608 = vsel %vm1580, %v1575, %v1245
      %v1609 = vsel %vm1580, %v1576, %v1247
      %v1610 = vsel %vm1580, %v1577, %v1249
      %v1611 = vsel %vm1580, %v1578, %v1251
      %v1612 = vsel %vm1580, %v1579, %v1253
      %vm1613 = vcmask 261120
      %v1614 = vsel %vm1613, %v1581, %v1287
      %v1615 = vsel %vm1613, %v1582, %v1289
      %v1616 = vsel %vm1613, %v1583, %v1291
      %v1617 = vsel %vm1613, %v1584, %v1293
      %v1618 = vsel %vm1613, %v1585, %v1295
      %v1619 = vsel %vm1613, %v1586, %v1297
      %v1620 = vsel %vm1613, %v1587, %v1299
      %v1621 = vsel %vm1613, %v1588, %v1301
      %v1622 = vsel %vm1613, %v1589, %v1303
      %v1623 = vsel %vm1613, %v1590, %v1305
      %v1624 = vsel %vm1613, %v1591, %v1307
      %v1625 = vsel %vm1613, %v1592, %v1309
      %v1626 = vsel %vm1613, %v1593, %v1311
      %v1627 = vsel %vm1613, %v1594, %v1313
      %v1628 = vsel %vm1613, %v1595, %v1315
      %v1629 = vsel %vm1613, %v1596, %v1317
      %v1630 = vsel %vm1613, %v1597, %v1319
      %v1631 = vsel %vm1613, %v1598, %v1321
      %v1632 = vsel %vm1613, %v1599, %v1323
      %v1633 = vsel %vm1613, %v1600, %v1325
      %v1634 = vsel %vm1613, %v1601, %v1327
      %v1635 = vsel %vm1613, %v1602, %v1329
      %v1636 = vsel %vm1613, %v1603, %v1331
      %v1637 = vsel %vm1613, %v1604, %v1333
      %v1638 = vsel %vm1613, %v1605, %v1335
      %v1639 = vsel %vm1613, %v1606, %v1337
      %v1640 = vsel %vm1613, %v1607, %v1339
      %v1641 = vsel %vm1613, %v1608, %v1341
      %v1642 = vsel %vm1613, %v1609, %v1343
      %v1643 = vsel %vm1613, %v1610, %v1345
      %v1644 = vsel %vm1613, %v1611, %v1347
      %v1645 = vsel %vm1613, %v1612, %v1349
      %v1646 = vpack.c.bf16 %v1615, %v1614
      %v1647 = vpack.c.bf16 %v1617, %v1616
      %v1648 = vpack.c.bf16 %v1619, %v1618
      %v1649 = vpack.c.bf16 %v1621, %v1620
      %v1650 = vpack.c.bf16 %v1623, %v1622
      %v1651 = vpack.c.bf16 %v1625, %v1624
      %v1652 = vpack.c.bf16 %v1627, %v1626
      %v1653 = vpack.c.bf16 %v1629, %v1628
      %v1654 = vpack.c.bf16 %v1631, %v1630
      %v1655 = vpack.c.bf16 %v1633, %v1632
      %v1656 = vpack.c.bf16 %v1635, %v1634
      %v1657 = vpack.c.bf16 %v1637, %v1636
      %v1658 = vpack.c.bf16 %v1639, %v1638
      %v1659 = vpack.c.bf16 %v1641, %v1640
      %v1660 = vpack.c.bf16 %v1643, %v1642
      %v1661 = vpack.c.bf16 %v1645, %v1644
      %v1662 = vld [vmem:[%s2] sm:$0x1]
      %v1664 = vperm.slane %v1662, 0
      %v1671 = vunpack.c.l.b16 %v204
      %v1672 = vunpack.c.l.b16 %v205
      %v1673 = vunpack.c.l.b16 %v206
      %v1674 = vunpack.c.l.b16 %v207
      %v1675 = vunpack.c.l.b16 %v208
      %v1676 = vpack.c.b16 %v1672, %v1671
      %v1677 = vpack.c.b16 %v1674, %v1673
      %v1678 = vpack.c.b16 %v1675, %v1675
      %vm1681 = vcmask 293888
      %v1683 = vsel %vm1681, %v1646, 0
      %v1686 = vsel %vm1681, %v1647, 0
      %v1689 = vsel %vm1681, %v1648, 0
      %v1692 = vsel %vm1681, %v1649, 0
      %v1695 = vsel %vm1681, %v1650, 0
      %v1698 = vsel %vm1681, %v1651, 0
      %v1701 = vsel %vm1681, %v1652, 0
      %v1704 = vsel %vm1681, %v1653, 0
      %v1707 = vsel %vm1681, %v1654, 0
      %v1710 = vsel %vm1681, %v1655, 0
      %v1713 = vsel %vm1681, %v1656, 0
      %v1716 = vsel %vm1681, %v1657, 0
      %v1719 = vsel %vm1681, %v1658, 0
      %v1722 = vsel %vm1681, %v1659, 0
      %v1725 = vsel %vm1681, %v1660, 0
      %v1728 = vsel %vm1681, %v1661, 0
      %vm1730 = vcmask 1041408
      %v1732 = vsel %vm1730, %v1678, 0
      %1734 = vmatpush.bf16.msra.mxu0 0
      %1735 = vmatpush.bf16.msra.mxu0 0
      %1736 = vmatpush.bf16.msra.mxu0 0
      %1737 = vmatpush.bf16.msra.mxu0 0
      %1738 = vmatpush.bf16.msra.mxu0 0
      %1739 = vmatpush.bf16.msra.mxu0 %v1732
      %1740 = vmatpush.bf16.msra.mxu0 %v1677
      %1741 = vmatpush.bf16.msra.mxu0 %v1676
      %1742 = vmatmul.bf16.gmra.mxu0 %v1683
      %v1743 = vpop.f32.mrf.mxu0
      %v1744 = vadd.f32 %v1664, %v1743
      %v1745 = vpop.f32.mrf.mxu0
      %v1746 = vadd.f32 %v1664, %v1745
      %1747 = vmatmul.bf16.gmra.mxu0 %v1686
      %v1748 = vpop.f32.mrf.mxu0
      %v1749 = vadd.f32 %v1664, %v1748
      %v1750 = vpop.f32.mrf.mxu0
      %v1751 = vadd.f32 %v1664, %v1750
      %1752 = vmatmul.bf16.gmra.mxu0 %v1689
      %v1753 = vpop.f32.mrf.mxu0
      %v1754 = vadd.f32 %v1664, %v1753
      %v1755 = vpop.f32.mrf.mxu0
      %v1756 = vadd.f32 %v1664, %v1755
      %1757 = vmatmul.bf16.gmra.mxu0 %v1692
      %v1758 = vpop.f32.mrf.mxu0
      %v1759 = vadd.f32 %v1664, %v1758
      %v1760 = vpop.f32.mrf.mxu0
      %v1761 = vadd.f32 %v1664, %v1760
      %1762 = vmatmul.bf16.gmra.mxu0 %v1695
      %v1763 = vpop.f32.mrf.mxu0
      %v1764 = vadd.f32 %v1664, %v1763
      %v1765 = vpop.f32.mrf.mxu0
      %v1766 = vadd.f32 %v1664, %v1765
      %1767 = vmatmul.bf16.gmra.mxu0 %v1698
      %v1768 = vpop.f32.mrf.mxu0
      %v1769 = vadd.f32 %v1664, %v1768
      %v1770 = vpop.f32.mrf.mxu0
      %v1771 = vadd.f32 %v1664, %v1770
      %1772 = vmatmul.bf16.gmra.mxu0 %v1701
      %v1773 = vpop.f32.mrf.mxu0
      %v1774 = vadd.f32 %v1664, %v1773
      %v1775 = vpop.f32.mrf.mxu0
      %v1776 = vadd.f32 %v1664, %v1775
      %1777 = vmatmul.bf16.gmra.mxu0 %v1704
      %v1778 = vpop.f32.mrf.mxu0
      %v1779 = vadd.f32 %v1664, %v1778
      %v1780 = vpop.f32.mrf.mxu0
      %v1781 = vadd.f32 %v1664, %v1780
      %1782 = vmatmul.bf16.gmra.mxu0 %v1707
      %v1783 = vpop.f32.mrf.mxu0
      %v1784 = vadd.f32 %v1664, %v1783
      %v1785 = vpop.f32.mrf.mxu0
      %v1786 = vadd.f32 %v1664, %v1785
      %1787 = vmatmul.bf16.gmra.mxu0 %v1710
      %v1788 = vpop.f32.mrf.mxu0
      %v1789 = vadd.f32 %v1664, %v1788
      %v1790 = vpop.f32.mrf.mxu0
      %v1791 = vadd.f32 %v1664, %v1790
      %1792 = vmatmul.bf16.gmra.mxu0 %v1713
      %v1793 = vpop.f32.mrf.mxu0
      %v1794 = vadd.f32 %v1664, %v1793
      %v1795 = vpop.f32.mrf.mxu0
      %v1796 = vadd.f32 %v1664, %v1795
      %1797 = vmatmul.bf16.gmra.mxu0 %v1716
      %v1798 = vpop.f32.mrf.mxu0
      %v1799 = vadd.f32 %v1664, %v1798
      %v1800 = vpop.f32.mrf.mxu0
      %v1801 = vadd.f32 %v1664, %v1800
      %1802 = vmatmul.bf16.gmra.mxu0 %v1719
      %v1803 = vpop.f32.mrf.mxu0
      %v1804 = vadd.f32 %v1664, %v1803
      %v1805 = vpop.f32.mrf.mxu0
      %v1806 = vadd.f32 %v1664, %v1805
      %1807 = vmatmul.bf16.gmra.mxu0 %v1722
      %v1808 = vpop.f32.mrf.mxu0
      %v1809 = vadd.f32 %v1664, %v1808
      %v1810 = vpop.f32.mrf.mxu0
      %v1811 = vadd.f32 %v1664, %v1810
      %1812 = vmatmul.bf16.gmra.mxu0 %v1725
      %v1813 = vpop.f32.mrf.mxu0
      %v1814 = vadd.f32 %v1664, %v1813
      %v1815 = vpop.f32.mrf.mxu0
      %v1816 = vadd.f32 %v1664, %v1815
      %1817 = vmatmul.bf16.gmra.mxu0 %v1728
      %v1818 = vpop.f32.mrf.mxu0
      %v1819 = vadd.f32 %v1664, %v1818
      %v1820 = vpop.f32.mrf.mxu0
      %v1821 = vadd.f32 %v1664, %v1820
      %1822 = vdwg.mxu0
      %v1823 = vmax.f32 %v1744, 0.0
      %v1824 = vmax.f32 %v1746, 0.0
      %v1825 = vmax.f32 %v1749, 0.0
      %v1826 = vmax.f32 %v1751, 0.0
      %v1827 = vmax.f32 %v1754, 0.0
      %v1828 = vmax.f32 %v1756, 0.0
      %v1829 = vmax.f32 %v1759, 0.0
      %v1830 = vmax.f32 %v1761, 0.0
      %v1831 = vmax.f32 %v1764, 0.0
      %v1832 = vmax.f32 %v1766, 0.0
      %v1833 = vmax.f32 %v1769, 0.0
      %v1834 = vmax.f32 %v1771, 0.0
      %v1835 = vmax.f32 %v1774, 0.0
      %v1836 = vmax.f32 %v1776, 0.0
      %v1837 = vmax.f32 %v1779, 0.0
      %v1838 = vmax.f32 %v1781, 0.0
      %v1839 = vmax.f32 %v1784, 0.0
      %v1840 = vmax.f32 %v1786, 0.0
      %v1841 = vmax.f32 %v1789, 0.0
      %v1842 = vmax.f32 %v1791, 0.0
      %v1843 = vmax.f32 %v1794, 0.0
      %v1844 = vmax.f32 %v1796, 0.0
      %v1845 = vmax.f32 %v1799, 0.0
      %v1846 = vmax.f32 %v1801, 0.0
      %v1847 = vmax.f32 %v1804, 0.0
      %v1848 = vmax.f32 %v1806, 0.0
      %v1849 = vmax.f32 %v1809, 0.0
      %v1850 = vmax.f32 %v1811, 0.0
      %v1851 = vmax.f32 %v1814, 0.0
      %v1852 = vmax.f32 %v1816, 0.0
      %v1853 = vmax.f32 %v1819, 0.0
      %v1854 = vmax.f32 %v1821, 0.0
      %v1855 = vpack.c.bf16 %v1823, %v1823
      %v1856 = vpack.c.bf16 %v1824, %v1824
      %v1857 = vpack.c.bf16 %v1825, %v1825
      %v1858 = vpack.c.bf16 %v1826, %v1826
      %v1859 = vpack.c.bf16 %v1827, %v1827
      %v1860 = vpack.c.bf16 %v1828, %v1828
      %v1861 = vpack.c.bf16 %v1829, %v1829
      %v1862 = vpack.c.bf16 %v1830, %v1830
      %v1863 = vpack.c.bf16 %v1831, %v1831
      %v1864 = vpack.c.bf16 %v1832, %v1832
      %v1865 = vpack.c.bf16 %v1833, %v1833
      %v1866 = vpack.c.bf16 %v1834, %v1834
      %v1867 = vpack.c.bf16 %v1835, %v1835
      %v1868 = vpack.c.bf16 %v1836, %v1836
      %v1869 = vpack.c.bf16 %v1837, %v1837
      %v1870 = vpack.c.bf16 %v1838, %v1838
      %v1871 = vpack.c.bf16 %v1839, %v1839
      %v1872 = vpack.c.bf16 %v1840, %v1840
      %v1873 = vpack.c.bf16 %v1841, %v1841
      %v1874 = vpack.c.bf16 %v1842, %v1842
      %v1875 = vpack.c.bf16 %v1843, %v1843
      %v1876 = vpack.c.bf16 %v1844, %v1844
      %v1877 = vpack.c.bf16 %v1845, %v1845
      %v1878 = vpack.c.bf16 %v1846, %v1846
      %v1879 = vpack.c.bf16 %v1847, %v1847
      %v1880 = vpack.c.bf16 %v1848, %v1848
      %v1881 = vpack.c.bf16 %v1849, %v1849
      %v1882 = vpack.c.bf16 %v1850, %v1850
      %v1883 = vpack.c.bf16 %v1851, %v1851
      %v1884 = vpack.c.bf16 %v1852, %v1852
      %v1885 = vpack.c.bf16 %v1853, %v1853
      %v1886 = vpack.c.bf16 %v1854, %v1854
      %vm1887 = vcmask 60416
      %1888 = vst.msk [vmem:[%s170] sm:$0xf] %vm1887, %v1855
      %1889 = vst.msk [vmem:[%s170 + $0x4] sm:$0xf] %vm1887, %v1856
      %1890 = vst.msk [vmem:[%s170 + $0x8] sm:$0xf] %vm1887, %v1857
      %1891 = vst.msk [vmem:[%s170 + $0xc] sm:$0xf] %vm1887, %v1858
      %1892 = vst.msk [vmem:[%s170 + $0x10] sm:$0xf] %vm1887, %v1859
      %1893 = vst.msk [vmem:[%s170 + $0x14] sm:$0xf] %vm1887, %v1860
      %1894 = vst.msk [vmem:[%s170 + $0x18] sm:$0xf] %vm1887, %v1861
      %1895 = vst.msk [vmem:[%s170 + $0x1c] sm:$0xf] %vm1887, %v1862
      %1896 = vst.msk [vmem:[%s170 + $0x20] sm:$0xf] %vm1887, %v1863
      %1897 = vst.msk [vmem:[%s170 + $0x24] sm:$0xf] %vm1887, %v1864
      %1898 = vst.msk [vmem:[%s170 + $0x28] sm:$0xf] %vm1887, %v1865
      %1899 = vst.msk [vmem:[%s170 + $0x2c] sm:$0xf] %vm1887, %v1866
      %1900 = vst.msk [vmem:[%s170 + $0x30] sm:$0xf] %vm1887, %v1867
      %1901 = vst.msk [vmem:[%s170 + $0x34] sm:$0xf] %vm1887, %v1868
      %1902 = vst.msk [vmem:[%s170 + $0x38] sm:$0xf] %vm1887, %v1869
      %1903 = vst.msk [vmem:[%s170 + $0x3c] sm:$0xf] %vm1887, %v1870
      %1904 = vst.msk [vmem:[%s170 + $0x40] sm:$0xf] %vm1887, %v1871
      %1905 = vst.msk [vmem:[%s170 + $0x44] sm:$0xf] %vm1887, %v1872
      %1906 = vst.msk [vmem:[%s170 + $0x48] sm:$0xf] %vm1887, %v1873
      %1907 = vst.msk [vmem:[%s170 + $0x4c] sm:$0xf] %vm1887, %v1874
      %1908 = vst.msk [vmem:[%s170 + $0x50] sm:$0xf] %vm1887, %v1875
      %1909 = vst.msk [vmem:[%s170 + $0x54] sm:$0xf] %vm1887, %v1876
      %1910 = vst.msk [vmem:[%s170 + $0x58] sm:$0xf] %vm1887, %v1877
      %1911 = vst.msk [vmem:[%s170 + $0x5c] sm:$0xf] %vm1887, %v1878
      %1912 = vst.msk [vmem:[%s170 + $0x60] sm:$0xf] %vm1887, %v1879
      %1913 = vst.msk [vmem:[%s170 + $0x64] sm:$0xf] %vm1887, %v1880
      %1914 = vst.msk [vmem:[%s170 + $0x68] sm:$0xf] %vm1887, %v1881
      %1915 = vst.msk [vmem:[%s170 + $0x6c] sm:$0xf] %vm1887, %v1882
      %1916 = vst.msk [vmem:[%s170 + $0x70] sm:$0xf] %vm1887, %v1883
      %1917 = vst.msk [vmem:[%s170 + $0x74] sm:$0xf] %vm1887, %v1884
      %1918 = vst.msk [vmem:[%s170 + $0x78] sm:$0xf] %vm1887, %v1885
      %1919 = vst.msk [vmem:[%s170 + $0x7c] sm:$0xf] %vm1887, %v1886
      %p1920 = scmp.lt.s32.totalorder %s14, 1
      %s1921 = scalar_select %p1920, %s14, 1
      %s1922 = smul.addr %s1921, 32
      %s1923 = smul.addr %s1922, 4
      %s1924 = scalar_lea.vmem %s3, %s1923
      // Predicated region
      $region33: #{tpu_custom_call.1} parent=31 // pred_check
        %p1925 = pneg %p100
      $region34: #{tpu_custom_call.1} parent=31 // pred_check_branch
        %1927 = sbr.rel (%p1925) target = $region36
      $region35: #{tpu_custom_call.1} parent=31 // pred_region
        _
      $region36: #{tpu_custom_call.1} parent=31 // pred_fallthru
        _
    $region32: #{tpu_custom_call.1} parent=5 // pred_fallthru
      _
    %p1928 = scmp.le.s32.totalorder 2, %s9
    // Predicated region
    $region37: #{tpu_custom_call.1} parent=5 // pred_check
      %p1929 = pneg %p1928
    $region38: #{tpu_custom_call.1} parent=5 // pred_check_branch
      %1931 = sbr.rel (%p1929) target = $region40
    $region39: #{tpu_custom_call.1} parent=5 // pred_region
      %s1932 = ssub.s32 %s9, 2
      // Predicated region
      $region41: #{tpu_custom_call.1} parent=39 // pred_check
        %p1933 = pneg %p106
      $region42: #{tpu_custom_call.1} parent=39 // pred_check_branch
        %1935 = sbr.rel (%p1933) target = $region44
      $region43: #{tpu_custom_call.1} parent=39 // pred_region
        %p1936 = scmp.lt.s32.totalorder %s15, 1
        %s1937 = scalar_select %p1936, %s15, 1
        %s1938 = smul.addr %s1937, 32
        %s1939 = smul.addr %s1938, 4
        %s1940 = scalar_lea.vmem %s3, %s1939
      $region44: #{tpu_custom_call.1} parent=39 // pred_fallthru
        _
    $region40: #{tpu_custom_call.1} parent=5 // pred_fallthru
      _
  $region6: #{tpu_custom_call.1} parent=0 // loop_footer
    %s13 = sadd.s32 1, %s9
  $region7: #{tpu_custom_call.1} parent=0 // loop_footer_branch
    %8 = sbr.rel target = $region3
  $region8: #{tpu_custom_call.1} parent=0 // loop_exit
    _

</llo_original>
